<compile_context>
chip_gen: v7x
topology: tpu7x:2x2x1
jax: 0.10.0
libtpu: 0.0.40
codegen_flags: <defaults>
</compile_context>

<pallas_src>
import functools

import jax
import jax.numpy as jnp
from jax import lax
from jax.experimental import pallas as pl
from jax.experimental.pallas import tpu as pltpu


# ----------------------------------------------------------------------------
# Kernel 1: upconv matmul  (ConvTranspose2d k=2 s=2, stride==kernel -> no overlap)
#   out[(kh,kw,co), m] = sum_ci Wt[ci,co,kh,kw] * up[ci, m] + b[co]
#   lane axis = m = n*H*W + h*W + w  (lane-dense stores), bf16 MXU, f32 accumulate
# ----------------------------------------------------------------------------
def _upconv_matmul_kernel(x_ref, w_ref, b_ref, o_ref):
    acc = jnp.dot(w_ref[...], x_ref[...], preferred_element_type=jnp.float32)
    o_ref[...] = (acc + b_ref[...]).astype(o_ref.dtype)


def upconv_matmul(x, w, b, *, tile=512):
    # x: (Cin, M) bf16, w: (4*Cout, Cin) bf16, b: (4*Cout, 1) f32
    K, M = x.shape
    R = w.shape[0]
    tn = tile if M % tile == 0 else (128 if M % 128 == 0 else M)
    return pl.pallas_call(
        _upconv_matmul_kernel,
        out_shape=jax.ShapeDtypeStruct((R, M), jnp.bfloat16),
        grid=(M // tn,),
        in_specs=[
            pl.BlockSpec((K, tn), lambda j: (0, j)),
            pl.BlockSpec((R, K), lambda j: (0, 0)),
            pl.BlockSpec((R, 1), lambda j: (0, 0)),
        ],
        out_specs=pl.BlockSpec((R, tn), lambda j: (0, j)),
        compiler_params=pltpu.CompilerParams(
            dimension_semantics=("parallel",),
        ),
    )(x, w, b)


# ----------------------------------------------------------------------------
# Kernel 2: fused  concat([y, down]) -> conv3x3 -> ReLU -> conv3x3 -> ReLU
# All activations in padded-flat layout (C, P), P = Wp*Hp, zero halo.
# ----------------------------------------------------------------------------
def _fused_convs_kernel(y_ref, d_ref, w1_ref, b1_ref, w2_ref, b2_ref, m_ref,
                        o_ref, scr_ref, *, wp: int, cout: int):
    # y_ref, d_ref : (1, cout, P) bf16   upconv output / encoder skip (zero halo)
    # w1_ref,w2_ref: (cout, 9*2*cout) f32 tap-major im2col weight matrices
    # b1_ref,b2_ref: (cout, 1) f32
    # m_ref        : (1, P) f32          interior mask (1 inside, 0 on halo)
    # o_ref        : (1, cout, P) f32    output in the same padded-flat layout
    # scr_ref      : (9*2*cout, P) f32   VMEM im2col scratch shared by both convs
    cin2 = 2 * cout
    mask = m_ref[...]

    def roll_lanes(x, shift):
        # np.roll semantics along the lane axis: rolled[q] = x[(q - shift) % n]
        n = x.shape[-1]
        s = shift % n
        if s == 0:
            return x
        return jnp.concatenate([x[:, n - s:], x[:, :n - s]], axis=1)

    def conv3x3(pieces, w_ref, b_ref):
        # Build the shifted-tap stack in VMEM (im2col-lite), then ONE deep matmul.
        # Stacked row  t*cin2 + k*cout + c   <->  weight column of the same index.
        for dy in range(3):
            for dx in range(3):
                t = dy * 3 + dx
                # output pixel q=(i+1)*Wp+(j+1) must read input at (i+dy)*Wp+(j+dx)
                shift = (1 - dy) * wp + (1 - dx)
                for k, piece in enumerate(pieces):
                    r0 = t * cin2 + k * cout
                    scr_ref[r0:r0 + cout, :] = roll_lanes(piece, shift)
        acc = jnp.dot(w_ref[...], scr_ref[...],
                      preferred_element_type=jnp.float32)
        # bias + ReLU, then zero the halo so the result is valid padding for the
        # next 3x3 conv (this replaces jnp.pad entirely).
        return jnp.maximum(acc + b_ref[...], 0.0) * mask

    y = y_ref[0].astype(jnp.float32)
    d = d_ref[0].astype(jnp.float32)
    # conv1: the channel concat is fused -> y taps and down taps share the scratch.
    h1 = conv3x3([y, d], w1_ref, b1_ref)
    # conv2: only the first `cout` rows of each tap are rewritten; the remaining
    # rows still hold conv1's down-taps but w2 carries zero weights there.
    h2 = conv3x3([h1], w2_ref, b2_ref)
    o_ref[0] = h2.astype(o_ref.dtype)


def fused_convs(y_pf, d_pf, w1, b1, w2, b2, mask, *, wp):
    N, Cout, P = y_pf.shape
    kernel = functools.partial(_fused_convs_kernel, wp=wp, cout=Cout)
    # TODO(synk): for production image sizes, add a spatial (row-block + 1-row
    # halo) grid axis and re-derive the tile / vmem_limit per TPU generation
    # (v7x has 64 MiB VMEM); at the test sizes a whole image per step is tiny.
    return pl.pallas_call(
        kernel,
        out_shape=jax.ShapeDtypeStruct((N, Cout, P), jnp.float32),
        grid=(N,),
        in_specs=[
            pl.BlockSpec((1, Cout, P), lambda n: (n, 0, 0)),
            pl.BlockSpec((1, Cout, P), lambda n: (n, 0, 0)),
            pl.BlockSpec((Cout, 18 * Cout), lambda n: (0, 0)),
            pl.BlockSpec((Cout, 1), lambda n: (0, 0)),
            pl.BlockSpec((Cout, 18 * Cout), lambda n: (0, 0)),
            pl.BlockSpec((Cout, 1), lambda n: (0, 0)),
            pl.BlockSpec((1, P), lambda n: (0, 0)),
        ],
        out_specs=pl.BlockSpec((1, Cout, P), lambda n: (n, 0, 0)),
        scratch_shapes=[pltpu.VMEM((18 * Cout, P), jnp.float32)],
        compiler_params=pltpu.CompilerParams(
            dimension_semantics=("parallel",),
            vmem_limit_bytes=48 * 1024 * 1024,
        ),
    )(y_pf, d_pf, w1, b1, w2, b2, mask)


# ----------------------------------------------------------------------------
# Full UnetUpConv forward (up_mode='transpose', merge_mode='concat')
# ----------------------------------------------------------------------------
def unet_up_conv(from_down, from_up, params):
    """from_down: (N, out_ch, 2H, 2W) NCHW; from_up: (N, in_ch, H, W) NCHW."""
    N, Cin, H, W = from_up.shape
    Cout = from_down.shape[1]
    H2, W2 = 2 * H, 2 * W
    Hp, Wp = H2 + 2, W2 + 2
    P = Hp * Wp
    cdt = jnp.bfloat16  # activations in HBM as bf16, accumulation stays f32

    # ---- 1) ConvTranspose2d(k=2, s=2) as a single lane-dense matmul ----------
    up_mat = jnp.transpose(from_up, (1, 0, 2, 3)).reshape(Cin, N * H * W)
    wu = jnp.transpose(params["upconv_w"], (2, 3, 1, 0)).reshape(4 * Cout, Cin)
    bu = jnp.tile(params["upconv_b"], 4).reshape(4 * Cout, 1).astype(jnp.float32)
    y_raw = upconv_matmul(up_mat.astype(cdt), wu.astype(cdt), bu)  # (4Cout, NHW)

    # ---- 2) layout plumbing (one fused XLA copy): pixel-shuffle + zero halo ---
    # TODO(synk): fold this stride-2 scatter into a kernel (BlockSpec cannot
    # express an interleaved write) to save this one remaining HBM pass.
    y6 = y_raw.reshape(2, 2, Cout, N, H, W)                      # (kh,kw,co,n,h,w)
    y_up = jnp.transpose(y6, (3, 2, 4, 0, 5, 1)).reshape(N, Cout, H2, W2)
    y_pf = jnp.pad(y_up, ((0, 0), (0, 0), (1, 1), (1, 1))).reshape(N, Cout, P)
    d_pf = jnp.pad(from_down.astype(cdt),
                   ((0, 0), (0, 0), (1, 1), (1, 1))).reshape(N, Cout, P)

    # ---- 3) conv weights as tap-major im2col matrices (Cout, 9 * 2*Cout) ------
    # torch Conv2d weight is (out, in, kH, kW); column = (dy*3+dx)*2Cout + c_in.
    w1 = jnp.transpose(params["conv1_w"], (0, 2, 3, 1)).reshape(Cout, 18 * Cout)
    w2p = jnp.pad(params["conv2_w"], ((0, 0), (0, Cout), (0, 0), (0, 0)))
    w2 = jnp.transpose(w2p, (0, 2, 3, 1)).reshape(Cout, 18 * Cout)
    b1 = params["conv1_b"].reshape(Cout, 1).astype(jnp.float32)
    b2 = params["conv2_b"].reshape(Cout, 1).astype(jnp.float32)

    mask = jnp.zeros((Hp, Wp), jnp.float32).at[1:-1, 1:-1].set(1.0).reshape(1, P)

    # ---- 4) fused concat-merge + conv1 + ReLU + conv2 + ReLU ------------------
    out_pf = fused_convs(y_pf, d_pf, w1.astype(jnp.float32), b1,
                         w2.astype(jnp.float32), b2, mask, wp=Wp)

    return out_pf.reshape(N, Cout, Hp, Wp)[:, :, 1:-1, 1:-1]     # NCHW


# ----------------------------------------------------------------------------
# Pure-JAX reference (mirrors the PyTorch module) for a correctness check.
# ----------------------------------------------------------------------------
def unet_up_conv_reference(from_down, from_up, params):
    N, Cin, H, W = from_up.shape
    Cout = params["upconv_b"].shape[0]
    y = jnp.einsum("nchw,cokl->nohkwl", from_up, params["upconv_w"])
    y = y.reshape(N, Cout, 2 * H, 2 * W) + params["upconv_b"][None, :, None, None]
    x = jnp.concatenate([y, from_down], axis=1)
    dn = ("NCHW", "OIHW", "NCHW")
    x = jax.nn.relu(
        lax.conv_general_dilated(x, params["conv1_w"], (1, 1), "SAME",
                                 dimension_numbers=dn)
        + params["conv1_b"][None, :, None, None])
    x = jax.nn.relu(
        lax.conv_general_dilated(x, params["conv2_w"], (1, 1), "SAME",
                                 dimension_numbers=dn)
        + params["conv2_b"][None, :, None, None])
    return x


if __name__ == "__main__":
    key = jax.random.PRNGKey(0)
    in_channels, out_channels = 8, 4
    N, H, W = 2, 8, 8  # from_up spatial size; from_down is 2x resolution

    k = jax.random.split(key, 8)
    from_up = jax.random.normal(k[0], (N, in_channels, H, W), jnp.float32)
    from_down = jax.random.normal(
        k[1], (N, out_channels, 2 * H, 2 * W), jnp.float32
    )

    # Deterministic synthetic parameters in the torch layouts.
    params = {
        # ConvTranspose2d(in_ch, out_ch, 2, 2): weight (Cin, Cout, 2, 2)
        "upconv_w": 0.1 * jax.random.normal(
            k[2], (in_channels, out_channels, 2, 2), jnp.float32),
        "upconv_b": 0.1 * jax.random.normal(k[3], (out_channels,), jnp.float32),
        # Conv2d(2*out_ch, out_ch, 3, padding=1): weight (Cout, 2*Cout, 3, 3)
        "conv1_w": 0.1 * jax.random.normal(
            k[4], (out_channels, 2 * out_channels, 3, 3), jnp.float32),
        "conv1_b": 0.1 * jax.random.normal(k[5], (out_channels,), jnp.float32),
        # Conv2d(out_ch, out_ch, 3, padding=1): weight (Cout, Cout, 3, 3)
        "conv2_w": 0.1 * jax.random.normal(
            k[6], (out_channels, out_channels, 3, 3), jnp.float32),
        "conv2_b": 0.1 * jax.random.normal(k[7], (out_channels,), jnp.float32),
    }

    out = jax.jit(unet_up_conv)(from_down, from_up, params)
    jax.block_until_ready(out)
    assert out.shape == (N, out_channels, 2 * H, 2 * W), out.shape
    assert bool(jnp.all(out >= 0.0))  # final ReLU

    ref = unet_up_conv_reference(from_down, from_up, params)
    err = float(jnp.max(jnp.abs(out - ref)))
    print(f"max |pallas - reference| = {err:.5f}")
    assert err < 5e-2, f"mismatch vs reference: {err}"
    print("KERNEL_OK")
</pallas_src>

<mosaic_0001>
module attributes {stable_mosaic.version = 11 : i64} {
  func.func @_upconv_matmul_kernel(%arg0: i32, %arg1: memref<8x128xbf16, #tpu.memory_space<vmem>>, %arg2: memref<16x8xbf16, #tpu.memory_space<vmem>>, %arg3: memref<16x1xf32, #tpu.memory_space<vmem>>, %arg4: memref<16x128xbf16, #tpu.memory_space<vmem>>) attributes {dimension_semantics = [#tpu.dimension_semantics<parallel>], iteration_bounds = array<i64: 1>, scalar_prefetch = 0 : i64, scratch_operands = 0 : i64, tpu.core_type = #tpu.core_type<tc>, window_params = [{transform_indices = @transform_0, window_bounds = array<i64: 8, 128>}, {pipeline_mode = #tpu.pipeline_mode<synchronous>, transform_indices = @transform_1, window_bounds = array<i64: 16, 8>}, {pipeline_mode = #tpu.pipeline_mode<synchronous>, transform_indices = @transform_2, window_bounds = array<i64: 16, 1>}, {transform_indices = @transform_3, window_bounds = array<i64: 16, 128>}]} {
    %c0 = arith.constant 0 : index
    %c0_0 = arith.constant 0 : index
    %0 = vector.load %arg2[%c0, %c0_0] : memref<16x8xbf16, #tpu.memory_space<vmem>>, vector<16x8xbf16>
    %c0_1 = arith.constant 0 : index
    %c0_2 = arith.constant 0 : index
    %1 = vector.load %arg1[%c0_1, %c0_2] : memref<8x128xbf16, #tpu.memory_space<vmem>>, vector<8x128xbf16>
    %cst = arith.constant dense<0.000000e+00> : vector<16x128xf32>
    %2 = tpu.matmul %0, %1, %cst {dimension_numbers = #tpu.dot_dimension_numbers<[1], [0], [0], [1], [0, 0, 1, 1], [], []>} : vector<16x8xbf16>, vector<8x128xbf16>, vector<16x128xf32> -> vector<16x128xf32>
    %c0_3 = arith.constant 0 : index
    %c0_4 = arith.constant 0 : index
    %3 = vector.load %arg3[%c0_3, %c0_4] : memref<16x1xf32, #tpu.memory_space<vmem>>, vector<16x1xf32>
    %4 = vector.broadcast %3 : vector<16x1xf32> to vector<16x128xf32>
    %5 = arith.addf %2, %4 : vector<16x128xf32>
    %6 = arith.truncf %5 : vector<16x128xf32> to vector<16x128xbf16>
    %c0_5 = arith.constant 0 : index
    %c0_6 = arith.constant 0 : index
    %7 = vector.load %arg4[%c0_5, %c0_6] : memref<16x128xbf16, #tpu.memory_space<vmem>>, vector<16x128xbf16>
    tpu.vector_store %arg4[%c0_5, %c0_6], %6 {strides = array<i32>} : memref<16x128xbf16, #tpu.memory_space<vmem>>, vector<16x128xbf16>,
    return
  }
  func.func @transform_0(%arg0: i32) -> (i32, i32) {
    %c0_i32 = arith.constant 0 : i32
    %c0_i32_0 = arith.constant 0 : i32
    return %c0_i32, %arg0 : i32, i32
  }
  func.func @transform_1(%arg0: i32) -> (i32, i32) {
    %c0_i32 = arith.constant 0 : i32
    %c0_i32_0 = arith.constant 0 : i32
    %c0_i32_1 = arith.constant 0 : i32
    return %c0_i32, %c0_i32_0 : i32, i32
  }
  func.func @transform_2(%arg0: i32) -> (i32, i32) {
    %c0_i32 = arith.constant 0 : i32
    %c0_i32_0 = arith.constant 0 : i32
    %c0_i32_1 = arith.constant 0 : i32
    return %c0_i32, %c0_i32_0 : i32, i32
  }
  func.func @transform_3(%arg0: i32) -> (i32, i32) {
    %c0_i32 = arith.constant 0 : i32
    %c0_i32_0 = arith.constant 0 : i32
    return %c0_i32, %arg0 : i32, i32
  }
}

module attributes {stable_mosaic.version = 11 : i64} {
  func.func @_fused_convs_kernel(%arg0: i32, %arg1: memref<1x4x324xbf16, #tpu.memory_space<vmem>>, %arg2: memref<1x4x324xbf16, #tpu.memory_space<vmem>>, %arg3: memref<4x72xf32, #tpu.memory_space<vmem>>, %arg4: memref<4x1xf32, #tpu.memory_space<vmem>>, %arg5: memref<4x72xf32, #tpu.memory_space<vmem>>, %arg6: memref<4x1xf32, #tpu.memory_space<vmem>>, %arg7: memref<1x324xf32, #tpu.memory_space<vmem>>, %arg8: memref<1x4x324xf32, #tpu.memory_space<vmem>>, %arg9: memref<72x324xf32, #tpu.memory_space<vmem>>) attributes {dimension_semantics = [#tpu.dimension_semantics<parallel>], iteration_bounds = array<i64: 2>, scalar_prefetch = 0 : i64, scratch_operands = 1 : i64, tpu.core_type = #tpu.core_type<tc>, window_params = [{transform_indices = @transform_0, window_bounds = array<i64: 1, 4, 324>}, {transform_indices = @transform_1, window_bounds = array<i64: 1, 4, 324>}, {pipeline_mode = #tpu.pipeline_mode<synchronous>, transform_indices = @transform_2, window_bounds = array<i64: 4, 72>}, {pipeline_mode = #tpu.pipeline_mode<synchronous>, transform_indices = @transform_3, window_bounds = array<i64: 4, 1>}, {pipeline_mode = #tpu.pipeline_mode<synchronous>, transform_indices = @transform_4, window_bounds = array<i64: 4, 72>}, {pipeline_mode = #tpu.pipeline_mode<synchronous>, transform_indices = @transform_5, window_bounds = array<i64: 4, 1>}, {pipeline_mode = #tpu.pipeline_mode<synchronous>, transform_indices = @transform_6, window_bounds = array<i64: 1, 324>}, {transform_indices = @transform_7, window_bounds = array<i64: 1, 4, 324>}]} {
    %c0 = arith.constant 0 : index
    %c0_0 = arith.constant 0 : index
    %0 = vector.load %arg7[%c0, %c0_0] : memref<1x324xf32, #tpu.memory_space<vmem>>, vector<1x324xf32>
    %c0_1 = arith.constant 0 : index
    %c0_2 = arith.constant 0 : index
    %c0_3 = arith.constant 0 : index
    %1 = vector.load %arg1[%c0_1, %c0_2, %c0_3] : memref<1x4x324xbf16, #tpu.memory_space<vmem>>, vector<1x4x324xbf16>
    %2 = vector.shape_cast %1 : vector<1x4x324xbf16> to vector<4x324xbf16>
    %3 = arith.extf %2 : vector<4x324xbf16> to vector<4x324xf32>
    %c0_4 = arith.constant 0 : index
    %c0_5 = arith.constant 0 : index
    %c0_6 = arith.constant 0 : index
    %4 = vector.load %arg2[%c0_4, %c0_5, %c0_6] : memref<1x4x324xbf16, #tpu.memory_space<vmem>>, vector<1x4x324xbf16>
    %5 = vector.shape_cast %4 : vector<1x4x324xbf16> to vector<4x324xbf16>
    %6 = arith.extf %5 : vector<4x324xbf16> to vector<4x324xf32>
    %7 = vector.extract_strided_slice %3 {offsets = [0, 305], sizes = [4, 19], strides = [1, 1]} : vector<4x324xf32> to vector<4x19xf32>
    %8 = vector.extract_strided_slice %3 {offsets = [0, 0], sizes = [4, 305], strides = [1, 1]} : vector<4x324xf32> to vector<4x305xf32>
    %9 = tpu.concatenate %7, %8 in 1 : vector<4x19xf32>, vector<4x305xf32> -> vector<4x324xf32>
    %c0_7 = arith.constant 0 : index
    %c0_8 = arith.constant 0 : index
    %10 = vector.load %arg9[%c0_7, %c0_8] : memref<72x324xf32, #tpu.memory_space<vmem>>, vector<4x324xf32>
    tpu.vector_store %arg9[%c0_7, %c0_8], %9 {strides = array<i32>} : memref<72x324xf32, #tpu.memory_space<vmem>>, vector<4x324xf32>,
    %11 = vector.extract_strided_slice %6 {offsets = [0, 305], sizes = [4, 19], strides = [1, 1]} : vector<4x324xf32> to vector<4x19xf32>
    %12 = vector.extract_strided_slice %6 {offsets = [0, 0], sizes = [4, 305], strides = [1, 1]} : vector<4x324xf32> to vector<4x305xf32>
    %13 = tpu.concatenate %11, %12 in 1 : vector<4x19xf32>, vector<4x305xf32> -> vector<4x324xf32>
    %c4 = arith.constant 4 : index
    %c0_9 = arith.constant 0 : index
    %14 = vector.load %arg9[%c4, %c0_9] : memref<72x324xf32, #tpu.memory_space<vmem>>, vector<4x324xf32>
    tpu.vector_store %arg9[%c4, %c0_9], %13 {strides = array<i32>} : memref<72x324xf32, #tpu.memory_space<vmem>>, vector<4x324xf32>,
    %15 = vector.extract_strided_slice %3 {offsets = [0, 306], sizes = [4, 18], strides = [1, 1]} : vector<4x324xf32> to vector<4x18xf32>
    %16 = vector.extract_strided_slice %3 {offsets = [0, 0], sizes = [4, 306], strides = [1, 1]} : vector<4x324xf32> to vector<4x306xf32>
    %17 = tpu.concatenate %15, %16 in 1 : vector<4x18xf32>, vector<4x306xf32> -> vector<4x324xf32>
    %c8 = arith.constant 8 : index
    %c0_10 = arith.constant 0 : index
    %18 = vector.load %arg9[%c8, %c0_10] : memref<72x324xf32, #tpu.memory_space<vmem>>, vector<4x324xf32>
    tpu.vector_store %arg9[%c8, %c0_10], %17 {strides = array<i32>} : memref<72x324xf32, #tpu.memory_space<vmem>>, vector<4x324xf32>,
    %19 = vector.extract_strided_slice %6 {offsets = [0, 306], sizes = [4, 18], strides = [1, 1]} : vector<4x324xf32> to vector<4x18xf32>
    %20 = vector.extract_strided_slice %6 {offsets = [0, 0], sizes = [4, 306], strides = [1, 1]} : vector<4x324xf32> to vector<4x306xf32>
    %21 = tpu.concatenate %19, %20 in 1 : vector<4x18xf32>, vector<4x306xf32> -> vector<4x324xf32>
    %c12 = arith.constant 12 : index
    %c0_11 = arith.constant 0 : index
    %22 = vector.load %arg9[%c12, %c0_11] : memref<72x324xf32, #tpu.memory_space<vmem>>, vector<4x324xf32>
    tpu.vector_store %arg9[%c12, %c0_11], %21 {strides = array<i32>} : memref<72x324xf32, #tpu.memory_space<vmem>>, vector<4x324xf32>,
    %23 = vector.extract_strided_slice %3 {offsets = [0, 307], sizes = [4, 17], strides = [1, 1]} : vector<4x324xf32> to vector<4x17xf32>
    %24 = vector.extract_strided_slice %3 {offsets = [0, 0], sizes = [4, 307], strides = [1, 1]} : vector<4x324xf32> to vector<4x307xf32>
    %25 = tpu.concatenate %23, %24 in 1 : vector<4x17xf32>, vector<4x307xf32> -> vector<4x324xf32>
    %c16 = arith.constant 16 : index
    %c0_12 = arith.constant 0 : index
    %26 = vector.load %arg9[%c16, %c0_12] : memref<72x324xf32, #tpu.memory_space<vmem>>, vector<4x324xf32>
    tpu.vector_store %arg9[%c16, %c0_12], %25 {strides = array<i32>} : memref<72x324xf32, #tpu.memory_space<vmem>>, vector<4x324xf32>,
    %27 = vector.extract_strided_slice %6 {offsets = [0, 307], sizes = [4, 17], strides = [1, 1]} : vector<4x324xf32> to vector<4x17xf32>
    %28 = vector.extract_strided_slice %6 {offsets = [0, 0], sizes = [4, 307], strides = [1, 1]} : vector<4x324xf32> to vector<4x307xf32>
    %29 = tpu.concatenate %27, %28 in 1 : vector<4x17xf32>, vector<4x307xf32> -> vector<4x324xf32>
    %c20 = arith.constant 20 : index
    %c0_13 = arith.constant 0 : index
    %30 = vector.load %arg9[%c20, %c0_13] : memref<72x324xf32, #tpu.memory_space<vmem>>, vector<4x324xf32>
    tpu.vector_store %arg9[%c20, %c0_13], %29 {strides = array<i32>} : memref<72x324xf32, #tpu.memory_space<vmem>>, vector<4x324xf32>,
    %31 = vector.extract_strided_slice %3 {offsets = [0, 323], sizes = [4, 1], strides = [1, 1]} : vector<4x324xf32> to vector<4x1xf32>
    %32 = vector.extract_strided_slice %3 {offsets = [0, 0], sizes = [4, 323], strides = [1, 1]} : vector<4x324xf32> to vector<4x323xf32>
    %33 = tpu.concatenate %31, %32 in 1 : vector<4x1xf32>, vector<4x323xf32> -> vector<4x324xf32>
    %c24 = arith.constant 24 : index
    %c0_14 = arith.constant 0 : index
    %34 = vector.load %arg9[%c24, %c0_14] : memref<72x324xf32, #tpu.memory_space<vmem>>, vector<4x324xf32>
    tpu.vector_store %arg9[%c24, %c0_14], %33 {strides = array<i32>} : memref<72x324xf32, #tpu.memory_space<vmem>>, vector<4x324xf32>,
    %35 = vector.extract_strided_slice %6 {offsets = [0, 323], sizes = [4, 1], strides = [1, 1]} : vector<4x324xf32> to vector<4x1xf32>
    %36 = vector.extract_strided_slice %6 {offsets = [0, 0], sizes = [4, 323], strides = [1, 1]} : vector<4x324xf32> to vector<4x323xf32>
    %37 = tpu.concatenate %35, %36 in 1 : vector<4x1xf32>, vector<4x323xf32> -> vector<4x324xf32>
    %c28 = arith.constant 28 : index
    %c0_15 = arith.constant 0 : index
    %38 = vector.load %arg9[%c28, %c0_15] : memref<72x324xf32, #tpu.memory_space<vmem>>, vector<4x324xf32>
    tpu.vector_store %arg9[%c28, %c0_15], %37 {strides = array<i32>} : memref<72x324xf32, #tpu.memory_space<vmem>>, vector<4x324xf32>,
    %c32 = arith.constant 32 : index
    %c0_16 = arith.constant 0 : index
    %39 = vector.load %arg9[%c32, %c0_16] : memref<72x324xf32, #tpu.memory_space<vmem>>, vector<4x324xf32>
    tpu.vector_store %arg9[%c32, %c0_16], %3 {strides = array<i32>} : memref<72x324xf32, #tpu.memory_space<vmem>>, vector<4x324xf32>,
    %c36 = arith.constant 36 : index
    %c0_17 = arith.constant 0 : index
    %40 = vector.load %arg9[%c36, %c0_17] : memref<72x324xf32, #tpu.memory_space<vmem>>, vector<4x324xf32>
    tpu.vector_store %arg9[%c36, %c0_17], %6 {strides = array<i32>} : memref<72x324xf32, #tpu.memory_space<vmem>>, vector<4x324xf32>,
    %41 = vector.extract_strided_slice %3 {offsets = [0, 1], sizes = [4, 323], strides = [1, 1]} : vector<4x324xf32> to vector<4x323xf32>
    %42 = vector.extract_strided_slice %3 {offsets = [0, 0], sizes = [4, 1], strides = [1, 1]} : vector<4x324xf32> to vector<4x1xf32>
    %43 = tpu.concatenate %41, %42 in 1 : vector<4x323xf32>, vector<4x1xf32> -> vector<4x324xf32>
    %c40 = arith.constant 40 : index
    %c0_18 = arith.constant 0 : index
    %44 = vector.load %arg9[%c40, %c0_18] : memref<72x324xf32, #tpu.memory_space<vmem>>, vector<4x324xf32>
    tpu.vector_store %arg9[%c40, %c0_18], %43 {strides = array<i32>} : memref<72x324xf32, #tpu.memory_space<vmem>>, vector<4x324xf32>,
    %45 = vector.extract_strided_slice %6 {offsets = [0, 1], sizes = [4, 323], strides = [1, 1]} : vector<4x324xf32> to vector<4x323xf32>
    %46 = vector.extract_strided_slice %6 {offsets = [0, 0], sizes = [4, 1], strides = [1, 1]} : vector<4x324xf32> to vector<4x1xf32>
    %47 = tpu.concatenate %45, %46 in 1 : vector<4x323xf32>, vector<4x1xf32> -> vector<4x324xf32>
    %c44 = arith.constant 44 : index
    %c0_19 = arith.constant 0 : index
    %48 = vector.load %arg9[%c44, %c0_19] : memref<72x324xf32, #tpu.memory_space<vmem>>, vector<4x324xf32>
    tpu.vector_store %arg9[%c44, %c0_19], %47 {strides = array<i32>} : memref<72x324xf32, #tpu.memory_space<vmem>>, vector<4x324xf32>,
    %49 = vector.extract_strided_slice %3 {offsets = [0, 17], sizes = [4, 307], strides = [1, 1]} : vector<4x324xf32> to vector<4x307xf32>
    %50 = vector.extract_strided_slice %3 {offsets = [0, 0], sizes = [4, 17], strides = [1, 1]} : vector<4x324xf32> to vector<4x17xf32>
    %51 = tpu.concatenate %49, %50 in 1 : vector<4x307xf32>, vector<4x17xf32> -> vector<4x324xf32>
    %c48 = arith.constant 48 : index
    %c0_20 = arith.constant 0 : index
    %52 = vector.load %arg9[%c48, %c0_20] : memref<72x324xf32, #tpu.memory_space<vmem>>, vector<4x324xf32>
    tpu.vector_store %arg9[%c48, %c0_20], %51 {strides = array<i32>} : memref<72x324xf32, #tpu.memory_space<vmem>>, vector<4x324xf32>,
    %53 = vector.extract_strided_slice %6 {offsets = [0, 17], sizes = [4, 307], strides = [1, 1]} : vector<4x324xf32> to vector<4x307xf32>
    %54 = vector.extract_strided_slice %6 {offsets = [0, 0], sizes = [4, 17], strides = [1, 1]} : vector<4x324xf32> to vector<4x17xf32>
    %55 = tpu.concatenate %53, %54 in 1 : vector<4x307xf32>, vector<4x17xf32> -> vector<4x324xf32>
    %c52 = arith.constant 52 : index
    %c0_21 = arith.constant 0 : index
    %56 = vector.load %arg9[%c52, %c0_21] : memref<72x324xf32, #tpu.memory_space<vmem>>, vector<4x324xf32>
    tpu.vector_store %arg9[%c52, %c0_21], %55 {strides = array<i32>} : memref<72x324xf32, #tpu.memory_space<vmem>>, vector<4x324xf32>,
    %57 = vector.extract_strided_slice %3 {offsets = [0, 18], sizes = [4, 306], strides = [1, 1]} : vector<4x324xf32> to vector<4x306xf32>
    %58 = vector.extract_strided_slice %3 {offsets = [0, 0], sizes = [4, 18], strides = [1, 1]} : vector<4x324xf32> to vector<4x18xf32>
    %59 = tpu.concatenate %57, %58 in 1 : vector<4x306xf32>, vector<4x18xf32> -> vector<4x324xf32>
    %c56 = arith.constant 56 : index
    %c0_22 = arith.constant 0 : index
    %60 = vector.load %arg9[%c56, %c0_22] : memref<72x324xf32, #tpu.memory_space<vmem>>, vector<4x324xf32>
    tpu.vector_store %arg9[%c56, %c0_22], %59 {strides = array<i32>} : memref<72x324xf32, #tpu.memory_space<vmem>>, vector<4x324xf32>,
    %61 = vector.extract_strided_slice %6 {offsets = [0, 18], sizes = [4, 306], strides = [1, 1]} : vector<4x324xf32> to vector<4x306xf32>
    %62 = vector.extract_strided_slice %6 {offsets = [0, 0], sizes = [4, 18], strides = [1, 1]} : vector<4x324xf32> to vector<4x18xf32>
    %63 = tpu.concatenate %61, %62 in 1 : vector<4x306xf32>, vector<4x18xf32> -> vector<4x324xf32>
    %c60 = arith.constant 60 : index
    %c0_23 = arith.constant 0 : index
    %64 = vector.load %arg9[%c60, %c0_23] : memref<72x324xf32, #tpu.memory_space<vmem>>, vector<4x324xf32>
    tpu.vector_store %arg9[%c60, %c0_23], %63 {strides = array<i32>} : memref<72x324xf32, #tpu.memory_space<vmem>>, vector<4x324xf32>,
    %65 = vector.extract_strided_slice %3 {offsets = [0, 19], sizes = [4, 305], strides = [1, 1]} : vector<4x324xf32> to vector<4x305xf32>
    %66 = vector.extract_strided_slice %3 {offsets = [0, 0], sizes = [4, 19], strides = [1, 1]} : vector<4x324xf32> to vector<4x19xf32>
    %67 = tpu.concatenate %65, %66 in 1 : vector<4x305xf32>, vector<4x19xf32> -> vector<4x324xf32>
    %c64 = arith.constant 64 : index
    %c0_24 = arith.constant 0 : index
    %68 = vector.load %arg9[%c64, %c0_24] : memref<72x324xf32, #tpu.memory_space<vmem>>, vector<4x324xf32>
    tpu.vector_store %arg9[%c64, %c0_24], %67 {strides = array<i32>} : memref<72x324xf32, #tpu.memory_space<vmem>>, vector<4x324xf32>,
    %69 = vector.extract_strided_slice %6 {offsets = [0, 19], sizes = [4, 305], strides = [1, 1]} : vector<4x324xf32> to vector<4x305xf32>
    %70 = vector.extract_strided_slice %6 {offsets = [0, 0], sizes = [4, 19], strides = [1, 1]} : vector<4x324xf32> to vector<4x19xf32>
    %71 = tpu.concatenate %69, %70 in 1 : vector<4x305xf32>, vector<4x19xf32> -> vector<4x324xf32>
    %c68 = arith.constant 68 : index
    %c0_25 = arith.constant 0 : index
    %72 = vector.load %arg9[%c68, %c0_25] : memref<72x324xf32, #tpu.memory_space<vmem>>, vector<4x324xf32>
    tpu.vector_store %arg9[%c68, %c0_25], %71 {strides = array<i32>} : memref<72x324xf32, #tpu.memory_space<vmem>>, vector<4x324xf32>,
    %c0_26 = arith.constant 0 : index
    %c0_27 = arith.constant 0 : index
    %73 = vector.load %arg3[%c0_26, %c0_27] : memref<4x72xf32, #tpu.memory_space<vmem>>, vector<4x72xf32>
    %c0_28 = arith.constant 0 : index
    %c0_29 = arith.constant 0 : index
    %74 = vector.load %arg9[%c0_28, %c0_29] : memref<72x324xf32, #tpu.memory_space<vmem>>, vector<72x324xf32>
    %cst = arith.constant dense<0.000000e+00> : vector<4x324xf32>
    %75 = tpu.matmul %73, %74, %cst {dimension_numbers = #tpu.dot_dimension_numbers<[1], [0], [0], [1], [0, 0, 1, 1], [], []>} : vector<4x72xf32>, vector<72x324xf32>, vector<4x324xf32> -> vector<4x324xf32>
    %c0_30 = arith.constant 0 : index
    %c0_31 = arith.constant 0 : index
    %76 = vector.load %arg4[%c0_30, %c0_31] : memref<4x1xf32, #tpu.memory_space<vmem>>, vector<4x1xf32>
    %77 = vector.broadcast %76 : vector<4x1xf32> to vector<4x324xf32>
    %78 = arith.addf %75, %77 : vector<4x324xf32>
    %cst_32 = arith.constant 0.000000e+00 : f32
    %79 = vector.broadcast %cst_32 : f32 to vector<4x324xf32>
    %80 = arith.maximumf %78, %79 : vector<4x324xf32>
    %81 = vector.broadcast %0 : vector<1x324xf32> to vector<4x324xf32>
    %82 = arith.mulf %80, %81 : vector<4x324xf32>
    %83 = vector.extract_strided_slice %82 {offsets = [0, 305], sizes = [4, 19], strides = [1, 1]} : vector<4x324xf32> to vector<4x19xf32>
    %84 = vector.extract_strided_slice %82 {offsets = [0, 0], sizes = [4, 305], strides = [1, 1]} : vector<4x324xf32> to vector<4x305xf32>
    %85 = tpu.concatenate %83, %84 in 1 : vector<4x19xf32>, vector<4x305xf32> -> vector<4x324xf32>
    %c0_33 = arith.constant 0 : index
    %c0_34 = arith.constant 0 : index
    %86 = vector.load %arg9[%c0_33, %c0_34] : memref<72x324xf32, #tpu.memory_space<vmem>>, vector<4x324xf32>
    tpu.vector_store %arg9[%c0_33, %c0_34], %85 {strides = array<i32>} : memref<72x324xf32, #tpu.memory_space<vmem>>, vector<4x324xf32>,
    %87 = vector.extract_strided_slice %82 {offsets = [0, 306], sizes = [4, 18], strides = [1, 1]} : vector<4x324xf32> to vector<4x18xf32>
    %88 = vector.extract_strided_slice %82 {offsets = [0, 0], sizes = [4, 306], strides = [1, 1]} : vector<4x324xf32> to vector<4x306xf32>
    %89 = tpu.concatenate %87, %88 in 1 : vector<4x18xf32>, vector<4x306xf32> -> vector<4x324xf32>
    %c8_35 = arith.constant 8 : index
    %c0_36 = arith.constant 0 : index
    %90 = vector.load %arg9[%c8_35, %c0_36] : memref<72x324xf32, #tpu.memory_space<vmem>>, vector<4x324xf32>
    tpu.vector_store %arg9[%c8_35, %c0_36], %89 {strides = array<i32>} : memref<72x324xf32, #tpu.memory_space<vmem>>, vector<4x324xf32>,
    %91 = vector.extract_strided_slice %82 {offsets = [0, 307], sizes = [4, 17], strides = [1, 1]} : vector<4x324xf32> to vector<4x17xf32>
    %92 = vector.extract_strided_slice %82 {offsets = [0, 0], sizes = [4, 307], strides = [1, 1]} : vector<4x324xf32> to vector<4x307xf32>
    %93 = tpu.concatenate %91, %92 in 1 : vector<4x17xf32>, vector<4x307xf32> -> vector<4x324xf32>
    %c16_37 = arith.constant 16 : index
    %c0_38 = arith.constant 0 : index
    %94 = vector.load %arg9[%c16_37, %c0_38] : memref<72x324xf32, #tpu.memory_space<vmem>>, vector<4x324xf32>
    tpu.vector_store %arg9[%c16_37, %c0_38], %93 {strides = array<i32>} : memref<72x324xf32, #tpu.memory_space<vmem>>, vector<4x324xf32>,
    %95 = vector.extract_strided_slice %82 {offsets = [0, 323], sizes = [4, 1], strides = [1, 1]} : vector<4x324xf32> to vector<4x1xf32>
    %96 = vector.extract_strided_slice %82 {offsets = [0, 0], sizes = [4, 323], strides = [1, 1]} : vector<4x324xf32> to vector<4x323xf32>
    %97 = tpu.concatenate %95, %96 in 1 : vector<4x1xf32>, vector<4x323xf32> -> vector<4x324xf32>
    %c24_39 = arith.constant 24 : index
    %c0_40 = arith.constant 0 : index
    %98 = vector.load %arg9[%c24_39, %c0_40] : memref<72x324xf32, #tpu.memory_space<vmem>>, vector<4x324xf32>
    tpu.vector_store %arg9[%c24_39, %c0_40], %97 {strides = array<i32>} : memref<72x324xf32, #tpu.memory_space<vmem>>, vector<4x324xf32>,
    %c32_41 = arith.constant 32 : index
    %c0_42 = arith.constant 0 : index
    %99 = vector.load %arg9[%c32_41, %c0_42] : memref<72x324xf32, #tpu.memory_space<vmem>>, vector<4x324xf32>
    tpu.vector_store %arg9[%c32_41, %c0_42], %82 {strides = array<i32>} : memref<72x324xf32, #tpu.memory_space<vmem>>, vector<4x324xf32>,
    %100 = vector.extract_strided_slice %82 {offsets = [0, 1], sizes = [4, 323], strides = [1, 1]} : vector<4x324xf32> to vector<4x323xf32>
    %101 = vector.extract_strided_slice %82 {offsets = [0, 0], sizes = [4, 1], strides = [1, 1]} : vector<4x324xf32> to vector<4x1xf32>
    %102 = tpu.concatenate %100, %101 in 1 : vector<4x323xf32>, vector<4x1xf32> -> vector<4x324xf32>
    %c40_43 = arith.constant 40 : index
    %c0_44 = arith.constant 0 : index
    %103 = vector.load %arg9[%c40_43, %c0_44] : memref<72x324xf32, #tpu.memory_space<vmem>>, vector<4x324xf32>
    tpu.vector_store %arg9[%c40_43, %c0_44], %102 {strides = array<i32>} : memref<72x324xf32, #tpu.memory_space<vmem>>, vector<4x324xf32>,
    %104 = vector.extract_strided_slice %82 {offsets = [0, 17], sizes = [4, 307], strides = [1, 1]} : vector<4x324xf32> to vector<4x307xf32>
    %105 = vector.extract_strided_slice %82 {offsets = [0, 0], sizes = [4, 17], strides = [1, 1]} : vector<4x324xf32> to vector<4x17xf32>
    %106 = tpu.concatenate %104, %105 in 1 : vector<4x307xf32>, vector<4x17xf32> -> vector<4x324xf32>
    %c48_45 = arith.constant 48 : index
    %c0_46 = arith.constant 0 : index
    %107 = vector.load %arg9[%c48_45, %c0_46] : memref<72x324xf32, #tpu.memory_space<vmem>>, vector<4x324xf32>
    tpu.vector_store %arg9[%c48_45, %c0_46], %106 {strides = array<i32>} : memref<72x324xf32, #tpu.memory_space<vmem>>, vector<4x324xf32>,
    %108 = vector.extract_strided_slice %82 {offsets = [0, 18], sizes = [4, 306], strides = [1, 1]} : vector<4x324xf32> to vector<4x306xf32>
    %109 = vector.extract_strided_slice %82 {offsets = [0, 0], sizes = [4, 18], strides = [1, 1]} : vector<4x324xf32> to vector<4x18xf32>
    %110 = tpu.concatenate %108, %109 in 1 : vector<4x306xf32>, vector<4x18xf32> -> vector<4x324xf32>
    %c56_47 = arith.constant 56 : index
    %c0_48 = arith.constant 0 : index
    %111 = vector.load %arg9[%c56_47, %c0_48] : memref<72x324xf32, #tpu.memory_space<vmem>>, vector<4x324xf32>
    tpu.vector_store %arg9[%c56_47, %c0_48], %110 {strides = array<i32>} : memref<72x324xf32, #tpu.memory_space<vmem>>, vector<4x324xf32>,
    %112 = vector.extract_strided_slice %82 {offsets = [0, 19], sizes = [4, 305], strides = [1, 1]} : vector<4x324xf32> to vector<4x305xf32>
    %113 = vector.extract_strided_slice %82 {offsets = [0, 0], sizes = [4, 19], strides = [1, 1]} : vector<4x324xf32> to vector<4x19xf32>
    %114 = tpu.concatenate %112, %113 in 1 : vector<4x305xf32>, vector<4x19xf32> -> vector<4x324xf32>
    %c64_49 = arith.constant 64 : index
    %c0_50 = arith.constant 0 : index
    %115 = vector.load %arg9[%c64_49, %c0_50] : memref<72x324xf32, #tpu.memory_space<vmem>>, vector<4x324xf32>
    tpu.vector_store %arg9[%c64_49, %c0_50], %114 {strides = array<i32>} : memref<72x324xf32, #tpu.memory_space<vmem>>, vector<4x324xf32>,
    %c0_51 = arith.constant 0 : index
    %c0_52 = arith.constant 0 : index
    %116 = vector.load %arg5[%c0_51, %c0_52] : memref<4x72xf32, #tpu.memory_space<vmem>>, vector<4x72xf32>
    %c0_53 = arith.constant 0 : index
    %c0_54 = arith.constant 0 : index
    %117 = vector.load %arg9[%c0_53, %c0_54] : memref<72x324xf32, #tpu.memory_space<vmem>>, vector<72x324xf32>
    %cst_55 = arith.constant dense<0.000000e+00> : vector<4x324xf32>
    %118 = tpu.matmul %116, %117, %cst_55 {dimension_numbers = #tpu.dot_dimension_numbers<[1], [0], [0], [1], [0, 0, 1, 1], [], []>} : vector<4x72xf32>, vector<72x324xf32>, vector<4x324xf32> -> vector<4x324xf32>
    %c0_56 = arith.constant 0 : index
    %c0_57 = arith.constant 0 : index
    %119 = vector.load %arg6[%c0_56, %c0_57] : memref<4x1xf32, #tpu.memory_space<vmem>>, vector<4x1xf32>
    %120 = vector.broadcast %119 : vector<4x1xf32> to vector<4x324xf32>
    %121 = arith.addf %118, %120 : vector<4x324xf32>
    %cst_58 = arith.constant 0.000000e+00 : f32
    %122 = vector.broadcast %cst_58 : f32 to vector<4x324xf32>
    %123 = arith.maximumf %121, %122 : vector<4x324xf32>
    %124 = vector.broadcast %0 : vector<1x324xf32> to vector<4x324xf32>
    %125 = arith.mulf %123, %124 : vector<4x324xf32>
    %c0_59 = arith.constant 0 : index
    %c0_60 = arith.constant 0 : index
    %c0_61 = arith.constant 0 : index
    %126 = vector.load %arg8[%c0_59, %c0_60, %c0_61] : memref<1x4x324xf32, #tpu.memory_space<vmem>>, vector<1x4x324xf32>
    %127 = vector.shape_cast %126 : vector<1x4x324xf32> to vector<4x324xf32>
    %128 = vector.shape_cast %125 : vector<4x324xf32> to vector<1x4x324xf32>
    tpu.vector_store %arg8[%c0_59, %c0_60, %c0_61], %128 {strides = array<i32>} : memref<1x4x324xf32, #tpu.memory_space<vmem>>, vector<1x4x324xf32>,
    return
  }
  func.func @transform_0(%arg0: i32) -> (i32, i32, i32) {
    %c0_i32 = arith.constant 0 : i32
    %c0_i32_0 = arith.constant 0 : i32
    %c0_i32_1 = arith.constant 0 : i32
    return %arg0, %c0_i32, %c0_i32_0 : i32, i32, i32
  }
  func.func @transform_1(%arg0: i32) -> (i32, i32, i32) {
    %c0_i32 = arith.constant 0 : i32
    %c0_i32_0 = arith.constant 0 : i32
    %c0_i32_1 = arith.constant 0 : i32
    return %arg0, %c0_i32, %c0_i32_0 : i32, i32, i32
  }
  func.func @transform_2(%arg0: i32) -> (i32, i32) {
    %c0_i32 = arith.constant 0 : i32
    %c0_i32_0 = arith.constant 0 : i32
    %c0_i32_1 = arith.constant 0 : i32
    return %c0_i32, %c0_i32_0 : i32, i32
  }
  func.func @transform_3(%arg0: i32) -> (i32, i32) {
    %c0_i32 = arith.constant 0 : i32
    %c0_i32_0 = arith.constant 0 : i32
    %c0_i32_1 = arith.constant 0 : i32
    return %c0_i32, %c0_i32_0 : i32, i32
  }
  func.func @transform_4(%arg0: i32) -> (i32, i32) {
    %c0_i32 = arith.constant 0 : i32
    %c0_i32_0 = arith.constant 0 : i32
    %c0_i32_1 = arith.constant 0 : i32
    return %c0_i32, %c0_i32_0 : i32, i32
  }
  func.func @transform_5(%arg0: i32) -> (i32, i32) {
    %c0_i32 = arith.constant 0 : i32
    %c0_i32_0 = arith.constant 0 : i32
    %c0_i32_1 = arith.constant 0 : i32
    return %c0_i32, %c0_i32_0 : i32, i32
  }
  func.func @transform_6(%arg0: i32) -> (i32, i32) {
    %c0_i32 = arith.constant 0 : i32
    %c0_i32_0 = arith.constant 0 : i32
    %c0_i32_1 = arith.constant 0 : i32
    return %c0_i32, %c0_i32_0 : i32, i32
  }
  func.func @transform_7(%arg0: i32) -> (i32, i32, i32) {
    %c0_i32 = arith.constant 0 : i32
    %c0_i32_0 = arith.constant 0 : i32
    %c0_i32_1 = arith.constant 0 : i32
    return %arg0, %c0_i32, %c0_i32_0 : i32, i32, i32
  }
}

</mosaic_0001>

<llo_original>
// kernel: tile.8
$region0: #{tile.8}
  #allocation0 [shape = 's32[1]{0}', space=sflag, size = 0x4, scoped, tag = 'scoped memory for tile.8']
  %s0 = inlined_call_operand.vmem [shape: f32[4], index: 0, kind: input, shape index: {}]
  %s1 = inlined_call_operand.vmem [shape: f32[4,4], index: 1, kind: output, shape index: {}]
  // Predicated region
  $region2: #{tile.8} parent=0 // pred_check
    _
  $region3: #{tile.8} parent=0 // pred_check_branch
    %3 = sbr.rel (0) target = $region5
  $region4: #{tile.8} parent=0 // pred_region
    _
  $region5: #{tile.8} parent=0 // pred_fallthru
    _
  %v4 = vld [vmem:[%s0] ss:$0 sm:$0xff]
  %5 = vst [vmem:[%s1] sm:$0xf] %v4

// kernel: tile.0
$region0: #{tile.0}
  %s0 = inlined_call_operand.vmem [shape: f32[4,4], index: 0, kind: input, shape index: {}]
  %s1 = inlined_call_operand.vmem [shape: f32[16,1], index: 1, kind: output, shape index: {}]
  $region1: #{tile.0} parent=0
    #allocation0 [shape = 'u8[4096]{0}', space=vmem, size = 0x1000, scoped, tag = 'scoped mem for input reshape']
    %s3 = sshllo.u32 0, 4
    %v4 = vld [vmem:[%s0] sm:%s3]
    %5 = vst [vmem:[#allocation0] sm:%s3] %v4
    %v6 = vld [vmem:[#allocation0] sm:$0xf]
    %vm7 = vcmask 7168
    %8 = vst.msk [vmem:[%s1] ss:$4 sm:$0xf] %vm7, %v6
    %v9 = vld [vmem:[#allocation0] sm:$0xf]
    %10 = vrot.lane.b32.xlu0 %v9, 127
    %v11 = vpop.permute.xlu0 %10
    %vm12 = vcmask 7168
    %s13 = scalar_lea.vmem %s1, 1
    %14 = vst.msk [vmem:[%s13] ss:$4 sm:$0xf] %vm12, %v11
    %v15 = vld [vmem:[#allocation0] sm:$0xf]
    %16 = vrot.lane.b32.xlu0 %v15, 126
    %v17 = vpop.permute.xlu0 %16
    %vm18 = vcmask 7168
    %s19 = scalar_lea.vmem %s1, 2
    %20 = vst.msk [vmem:[%s19] ss:$4 sm:$0xf] %vm18, %v17
    %v21 = vld [vmem:[#allocation0] sm:$0xf]
    %22 = vrot.lane.b32.xlu0 %v21, 125
    %v23 = vpop.permute.xlu0 %22
    %vm24 = vcmask 7168
    %s25 = scalar_lea.vmem %s1, 3
    %26 = vst.msk [vmem:[%s25] ss:$4 sm:$0xf] %vm24, %v23

// kernel: unet_up_conv.2
$region0: #{unet_up_conv.2}
  #allocation0 [shape = 'u32[]', space=smem, size = 0x4, offset = 0x4, fixed_abs, tag = 'smem constant byte address 0x4 - core index']
  #allocation1 [shape = 'u32[144,128]{1,0:T(1,128)}', space=vmem, size = 0x12000, scoped, tag = 'internal scratch']
  %s0 = inlined_call_operand.vmem [shape: bf16[8,128], index: 0, kind: input, shape index: {}]
  %s1 = inlined_call_operand.vmem [shape: bf16[16,8], index: 1, kind: input, shape index: {}]
  %s2 = inlined_call_operand.vmem [shape: f32[16,1], index: 2, kind: input, shape index: {}]
  %s3 = inlined_call_operand.vmem [shape: bf16[16,128], index: 3, kind: output, shape index: {}]
  %s4 = sld [smem:[#allocation0]]
  $region22: #{unet_up_conv.2} parent=0
    _
  %s6 = ssub.s32 1, %s4
  %s7 = scalar_select 0, %s6, %s4
  // Predicated region
  $region2: #{unet_up_conv.2} parent=0 // pred_check
    _
  $region3: #{unet_up_conv.2} parent=0 // pred_check_branch
    %9 = sbr.rel (0) target = $region5
  $region4: #{unet_up_conv.2} parent=0 // pred_region
    _
  $region5: #{unet_up_conv.2} parent=0 // pred_fallthru
    _
  // Predicated region
  $region6: #{unet_up_conv.2} parent=0 // pred_check
    _
  $region7: #{unet_up_conv.2} parent=0 // pred_check_branch
    %11 = sbr.rel (0) target = $region9
  $region8: #{unet_up_conv.2} parent=0 // pred_region
    _
  $region9: #{unet_up_conv.2} parent=0 // pred_fallthru
    _
  // Predicated region
  $region10: #{unet_up_conv.2} parent=0 // pred_check
    _
  $region11: #{unet_up_conv.2} parent=0 // pred_check_branch
    %13 = sbr.rel (0) target = $region13
  $region12: #{unet_up_conv.2} parent=0 // pred_region
    _
  $region13: #{unet_up_conv.2} parent=0 // pred_fallthru
    _
  %v15 = vld [vmem:[%s1] sm:$0xf]
  %v16 = vld [vmem:[%s1 + $0x4] sm:$0xf]
  %v17 = vld [vmem:[%s0] sm:$0xf]
  %v18 = vld [vmem:[%s2] sm:$0xff]
  %v19 = vld [vmem:[%s2 + $0x8] sm:$0xff]
  %21 = vset.pattern.permute.xlu0 0
  %22 = vperm.xlu0 %21, %v18
  %v23 = vpop.permute.xlu0 %22
  %26 = vset.pattern.permute.xlu0 0
  %27 = vperm.xlu0 %26, %v19
  %v28 = vpop.permute.xlu0 %27
  %v32 = vunpack.c.l.b16 %v15
  %v33 = vunpack.c.l.b16 %v16
  %v34 = vpack.c.b16 %v33, %v32
  %vm35 = vcmask 64512
  %v37 = vsel %vm35, %v34, 0
  %vm39 = vcmask 1043456
  %v41 = vsel %vm39, %v17, 0
  %43 = vmatprep.subr.bf16.mxu0 0
  %44 = vmatpush1.bf16.msra.mxu0 %v41
  %45 = vmatprep.subr.bf16.mxu0 0
  %46 = vmatpush1.bf16.msra.mxu0 0
  %47 = vmatprep.subr.bf16.mxu0 0
  %48 = vmatpush1.bf16.msra.mxu0 0
  %49 = vmatprep.subr.bf16.mxu0 0
  %50 = vmatpush1.bf16.msra.mxu0 0
  %51 = vmatprep.subr.bf16.mxu0 0
  %52 = vmatpush1.bf16.msra.mxu0 0
  %53 = vmatprep.subr.bf16.mxu0 0
  %54 = vmatpush1.bf16.msra.mxu0 0
  %55 = vmatprep.subr.bf16.mxu0 0
  %56 = vmatpush1.bf16.msra.mxu0 0
  %57 = vmatprep.subr.bf16.mxu0 0
  %58 = vmatpush1.bf16.msra.mxu0 0
  %59 = vmatprep.subr.bf16.mxu0 0
  %60 = vmatpush1.bf16.msra.mxu0 0
  %61 = vmatprep.subr.bf16.mxu0 0
  %62 = vmatpush1.bf16.msra.mxu0 0
  %63 = vmatprep.subr.bf16.mxu0 0
  %64 = vmatpush1.bf16.msra.mxu0 0
  %65 = vmatprep.subr.bf16.mxu0 0
  %66 = vmatpush1.bf16.msra.mxu0 0
  %67 = vmatprep.subr.bf16.mxu0 0
  %68 = vmatpush1.bf16.msra.mxu0 0
  %69 = vmatprep.subr.bf16.mxu0 0
  %70 = vmatpush1.bf16.msra.mxu0 0
  %71 = vmatprep.subr.bf16.mxu0 0
  %72 = vmatpush1.bf16.msra.mxu0 0
  %73 = vmatprep.subr.bf16.mxu0 0
  %74 = vmatpush1.bf16.msra.mxu0 0
  %75 = vmatprep.mubr.bf16.mxu0 0
  %76 = vmatmul.mubr.bf16.gmra.mrb[0].mxu0 %v37
  %v77 = vpop.f32.mrb[0].mxu0
  %v78 = vadd.f32 %v23, %v77
  %v79 = vpop.f32.mrb[0].mxu0
  %v80 = vpop.f32.mrb[0].mxu0
  %v81 = vadd.f32 %v28, %v80
  %v82 = vpop.f32.mrb[0].mxu0
  %83 = vdwg.mxu0
  %v84 = vpack.c.bf16 %v81, %v78
  %v86 = vunpack.c.l.b16 %v84
  %v87 = vunpack.c.h.b16 %v84
  %v88 = vpack.c.b16 %v86, %v86
  %v89 = vpack.c.b16 %v87, %v87
  %92 = vst [vmem:[%s3] sm:$0xf] %v88
  %93 = vst [vmem:[%s3 + $0x4] sm:$0xf] %v89
  // Predicated region
  $region14: #{unet_up_conv.2} parent=0 // pred_check
    _
  $region15: #{unet_up_conv.2} parent=0 // pred_check_branch
    %95 = sbr.rel (0) target = $region17
  $region16: #{unet_up_conv.2} parent=0 // pred_region
    _
  $region17: #{unet_up_conv.2} parent=0 // pred_fallthru
    _
  // Predicated region
  $region18: #{unet_up_conv.2} parent=0 // pred_check
    _
  $region19: #{unet_up_conv.2} parent=0 // pred_check_branch
    %97 = sbr.rel (0) target = $region21
  $region20: #{unet_up_conv.2} parent=0 // pred_region
    _
  $region21: #{unet_up_conv.2} parent=0 // pred_fallthru
    _

// kernel: unet_up_conv.3
$region0: #{unet_up_conv.3}
  #allocation0 [shape = 'u32[]', space=smem, size = 0x4, offset = 0x4, fixed_abs, tag = 'smem constant byte address 0x4 - core index']
  #allocation1 [shape = 'u32[144,128]{1,0:T(1,128)}', space=vmem, size = 0x12000, scoped, tag = 'internal scratch']
  #allocation2 [shape = 'f32[72,324]{1,0:T(8,128)}', space=vmem, size = 0x1b000, scoped, tag = 'scratch operand']
  %s0 = inlined_call_operand.vmem [shape: bf16[2,4,324], index: 0, kind: input, shape index: {}]
  %s1 = inlined_call_operand.vmem [shape: bf16[2,4,324], index: 1, kind: input, shape index: {}]
  %s2 = inlined_call_operand.vmem [shape: f32[4,72], index: 2, kind: input, shape index: {}]
  %s3 = inlined_call_operand.vmem [shape: f32[4,1], index: 3, kind: input, shape index: {}]
  %s4 = inlined_call_operand.vmem [shape: f32[4,72], index: 4, kind: input, shape index: {}]
  %s5 = inlined_call_operand.vmem [shape: f32[4,1], index: 5, kind: input, shape index: {}]
  %s6 = inlined_call_operand.vmem [shape: f32[1,324], index: 6, kind: input, shape index: {}]
  %s7 = inlined_call_operand.vmem [shape: f32[2,4,324], index: 7, kind: output, shape index: {}]
  %s8 = sld [smem:[#allocation0]]
  $region61: #{unet_up_conv.3} parent=0
    _
  %s10 = ssub.s32 1, %s8
  %s11 = scalar_select 0, %s10, %s8
  loop: start=0, step=1, limit=4
  $region2: #{unet_up_conv.3} parent=0 // loop_pre_header
    _
  $region3: #{unet_up_conv.3} parent=0 // loop_header
    %s13 = sphi 0, %s17
    %p14 = scmp.ge.s32.totalorder %s13, 4
    %s23 = sphi 0, %s25
    %s26 = sphi 0, %s23
    %s27 = sphi 0, %s26
    %s43 = sphi 0, %s27
    %s49 = sphi 0, %s51
    %s52 = sphi 0, %s49
    %s53 = sphi 0, %s52
    %s69 = sphi 0, %s53
    %s73 = sphi 0, %s73
    %s75 = sphi 0, %s73
    %s76 = sphi 0, %s75
    %s90 = sphi 0, %s76
    %s94 = sphi 0, %s94
    %s96 = sphi 0, %s94
    %s97 = sphi 0, %s96
    %s111 = sphi 0, %s97
    %s115 = sphi 0, %s115
    %s117 = sphi 0, %s115
    %s118 = sphi 0, %s117
    %s132 = sphi 0, %s118
    %s136 = sphi 0, %s136
    %s138 = sphi 0, %s136
    %s139 = sphi 0, %s138
    %s153 = sphi 0, %s139
    %s157 = sphi 0, %s157
    %s159 = sphi 0, %s157
    %s160 = sphi 0, %s159
    %s174 = sphi 0, %s160
    %s180 = sphi 0, %s182
    %s183 = sphi 0, %s180
    %s184 = sphi 0, %s183
    %s200 = sphi 0, %s184
  $region4: #{unet_up_conv.3} parent=0 // loop_header_branch
    %16 = sbr.rel (%p14) target = $region8
  $region5: #{unet_up_conv.3} parent=0 // loop_body
    %s18 = ssub.s32 %s13, 1
    %s19 = ssub.s32 %s13, 2
    %s20 = sadd.s32 %s13, 1
    %s21 = ssub.s32 %s13, %s20
    %p22 = scmp.eq.s32.totalorder %s21, 0
    %s24 = sadd.s32 %s23, 1
    %s25 = scalar_select %p22, %s23, %s24
    %p28 = pneg %p22
    %p29 = scmp.eq.s32.totalorder %s13, 1
    %p30 = por %p28, %p29
    %p31 = scmp.ne.s32.totalorder %s23, %s26
    %p32 = scmp.eq.s32.totalorder %s13, 0
    %p33 = por %p31, %p32
    %p34 = scmp.ne.s32.totalorder %s23, %s26
    %p35 = scmp.eq.s32.totalorder %s18, 1
    %p36 = por %p34, %p35
    %p37 = scmp.ne.s32.totalorder %s26, %s27
    %p38 = scmp.eq.s32.totalorder %s18, 0
    %p39 = por %p37, %p38
    %p40 = scmp.ne.s32.totalorder %s26, %s27
    %p41 = scmp.eq.s32.totalorder %s19, 1
    %p42 = por %p40, %p41
    %p44 = scmp.ne.s32.totalorder %s27, %s43
    %p45 = scmp.eq.s32.totalorder %s19, 0
    %p46 = por %p44, %p45
    %s47 = ssub.s32 %s13, %s20
    %p48 = scmp.eq.s32.totalorder %s47, 0
    %s50 = sadd.s32 %s49, 1
    %s51 = scalar_select %p48, %s49, %s50
    %p54 = pneg %p48
    %p55 = scmp.eq.s32.totalorder %s13, 1
    %p56 = por %p54, %p55
    %p57 = scmp.ne.s32.totalorder %s49, %s52
    %p58 = scmp.eq.s32.totalorder %s13, 0
    %p59 = por %p57, %p58
    %p60 = scmp.ne.s32.totalorder %s49, %s52
    %p61 = scmp.eq.s32.totalorder %s18, 1
    %p62 = por %p60, %p61
    %p63 = scmp.ne.s32.totalorder %s52, %s53
    %p64 = scmp.eq.s32.totalorder %s18, 0
    %p65 = por %p63, %p64
    %p66 = scmp.ne.s32.totalorder %s52, %s53
    %p67 = scmp.eq.s32.totalorder %s19, 1
    %p68 = por %p66, %p67
    %p70 = scmp.ne.s32.totalorder %s53, %s69
    %p71 = scmp.eq.s32.totalorder %s19, 0
    %p72 = por %p70, %p71
    %s74 = sadd.s32 %s73, 1
    %p77 = scmp.eq.s32.totalorder %s13, 1
    %p78 = scmp.ne.s32.totalorder %s73, %s75
    %p79 = scmp.eq.s32.totalorder %s13, 0
    %p80 = por %p78, %p79
    %p81 = scmp.ne.s32.totalorder %s73, %s75
    %p82 = scmp.eq.s32.totalorder %s18, 1
    %p83 = por %p81, %p82
    %p84 = scmp.ne.s32.totalorder %s75, %s76
    %p85 = scmp.eq.s32.totalorder %s18, 0
    %p86 = por %p84, %p85
    %p87 = scmp.ne.s32.totalorder %s75, %s76
    %p88 = scmp.eq.s32.totalorder %s19, 1
    %p89 = por %p87, %p88
    %p91 = scmp.ne.s32.totalorder %s76, %s90
    %p92 = scmp.eq.s32.totalorder %s19, 0
    %p93 = por %p91, %p92
    %s95 = sadd.s32 %s94, 1
    %p98 = scmp.eq.s32.totalorder %s13, 1
    %p99 = scmp.ne.s32.totalorder %s94, %s96
    %p100 = scmp.eq.s32.totalorder %s13, 0
    %p101 = por %p99, %p100
    %p102 = scmp.ne.s32.totalorder %s94, %s96
    %p103 = scmp.eq.s32.totalorder %s18, 1
    %p104 = por %p102, %p103
    %p105 = scmp.ne.s32.totalorder %s96, %s97
    %p106 = scmp.eq.s32.totalorder %s18, 0
    %p107 = por %p105, %p106
    %p108 = scmp.ne.s32.totalorder %s96, %s97
    %p109 = scmp.eq.s32.totalorder %s19, 1
    %p110 = por %p108, %p109
    %p112 = scmp.ne.s32.totalorder %s97, %s111
    %p113 = scmp.eq.s32.totalorder %s19, 0
    %p114 = por %p112, %p113
    %s116 = sadd.s32 %s115, 1
    %p119 = scmp.eq.s32.totalorder %s13, 1
    %p120 = scmp.ne.s32.totalorder %s115, %s117
    %p121 = scmp.eq.s32.totalorder %s13, 0
    %p122 = por %p120, %p121
    %p123 = scmp.ne.s32.totalorder %s115, %s117
    %p124 = scmp.eq.s32.totalorder %s18, 1
    %p125 = por %p123, %p124
    %p126 = scmp.ne.s32.totalorder %s117, %s118
    %p127 = scmp.eq.s32.totalorder %s18, 0
    %p128 = por %p126, %p127
    %p129 = scmp.ne.s32.totalorder %s117, %s118
    %p130 = scmp.eq.s32.totalorder %s19, 1
    %p131 = por %p129, %p130
    %p133 = scmp.ne.s32.totalorder %s118, %s132
    %p134 = scmp.eq.s32.totalorder %s19, 0
    %p135 = por %p133, %p134
    %s137 = sadd.s32 %s136, 1
    %p140 = scmp.eq.s32.totalorder %s13, 1
    %p141 = scmp.ne.s32.totalorder %s136, %s138
    %p142 = scmp.eq.s32.totalorder %s13, 0
    %p143 = por %p141, %p142
    %p144 = scmp.ne.s32.totalorder %s136, %s138
    %p145 = scmp.eq.s32.totalorder %s18, 1
    %p146 = por %p144, %p145
    %p147 = scmp.ne.s32.totalorder %s138, %s139
    %p148 = scmp.eq.s32.totalorder %s18, 0
    %p149 = por %p147, %p148
    %p150 = scmp.ne.s32.totalorder %s138, %s139
    %p151 = scmp.eq.s32.totalorder %s19, 1
    %p152 = por %p150, %p151
    %p154 = scmp.ne.s32.totalorder %s139, %s153
    %p155 = scmp.eq.s32.totalorder %s19, 0
    %p156 = por %p154, %p155
    %s158 = sadd.s32 %s157, 1
    %p161 = scmp.eq.s32.totalorder %s13, 1
    %p162 = scmp.ne.s32.totalorder %s157, %s159
    %p163 = scmp.eq.s32.totalorder %s13, 0
    %p164 = por %p162, %p163
    %p165 = scmp.ne.s32.totalorder %s157, %s159
    %p166 = scmp.eq.s32.totalorder %s18, 1
    %p167 = por %p165, %p166
    %p168 = scmp.ne.s32.totalorder %s159, %s160
    %p169 = scmp.eq.s32.totalorder %s18, 0
    %p170 = por %p168, %p169
    %p171 = scmp.ne.s32.totalorder %s159, %s160
    %p172 = scmp.eq.s32.totalorder %s19, 1
    %p173 = por %p171, %p172
    %p175 = scmp.ne.s32.totalorder %s160, %s174
    %p176 = scmp.eq.s32.totalorder %s19, 0
    %p177 = por %p175, %p176
    %s178 = ssub.s32 %s13, %s20
    %p179 = scmp.eq.s32.totalorder %s178, 0
    %s181 = sadd.s32 %s180, 1
    %s182 = scalar_select %p179, %s180, %s181
    %p185 = pneg %p179
    %p186 = scmp.eq.s32.totalorder %s13, 1
    %p187 = por %p185, %p186
    %p188 = scmp.ne.s32.totalorder %s180, %s183
    %p189 = scmp.eq.s32.totalorder %s13, 0
    %p190 = por %p188, %p189
    %p191 = scmp.ne.s32.totalorder %s180, %s183
    %p192 = scmp.eq.s32.totalorder %s18, 1
    %p193 = por %p191, %p192
    %p194 = scmp.ne.s32.totalorder %s183, %s184
    %p195 = scmp.eq.s32.totalorder %s18, 0
    %p196 = por %p194, %p195
    %p197 = scmp.ne.s32.totalorder %s183, %s184
    %p198 = scmp.eq.s32.totalorder %s19, 1
    %p199 = por %p197, %p198
    %p201 = scmp.ne.s32.totalorder %s184, %s200
    %p202 = scmp.eq.s32.totalorder %s19, 0
    %p203 = por %p201, %p202
    %p204 = scmp.le.s32.totalorder 1, %s13
    %p205 = scmp.lt.s32.totalorder %s13, 3
    %p206 = pnand %p204, %p205
    %p207 = pneg %p206
    // Predicated region
    $region9: #{unet_up_conv.3} parent=5 // pred_check
      _
    $region10: #{unet_up_conv.3} parent=5 // pred_check_branch
      %209 = sbr.rel (%p206) target = $region12
    $region11: #{unet_up_conv.3} parent=5 // pred_region
      %s210 = ssub.s32 %s13, 1
      // Predicated region
      $region13: #{unet_up_conv.3} parent=11 // pred_check
        %p211 = pneg %p86
      $region14: #{unet_up_conv.3} parent=11 // pred_check_branch
        %213 = sbr.rel (%p211) target = $region16
      $region15: #{unet_up_conv.3} parent=11 // pred_region
        _
      $region16: #{unet_up_conv.3} parent=11 // pred_fallthru
        _
      // Predicated region
      $region17: #{unet_up_conv.3} parent=11 // pred_check
        %p214 = pneg %p107
      $region18: #{unet_up_conv.3} parent=11 // pred_check_branch
        %216 = sbr.rel (%p214) target = $region20
      $region19: #{unet_up_conv.3} parent=11 // pred_region
        _
      $region20: #{unet_up_conv.3} parent=11 // pred_fallthru
        _
      // Predicated region
      $region21: #{unet_up_conv.3} parent=11 // pred_check
        %p217 = pneg %p128
      $region22: #{unet_up_conv.3} parent=11 // pred_check_branch
        %219 = sbr.rel (%p217) target = $region24
      $region23: #{unet_up_conv.3} parent=11 // pred_region
        _
      $region24: #{unet_up_conv.3} parent=11 // pred_fallthru
        _
      // Predicated region
      $region25: #{unet_up_conv.3} parent=11 // pred_check
        %p220 = pneg %p149
      $region26: #{unet_up_conv.3} parent=11 // pred_check_branch
        %222 = sbr.rel (%p220) target = $region28
      $region27: #{unet_up_conv.3} parent=11 // pred_region
        _
      $region28: #{unet_up_conv.3} parent=11 // pred_fallthru
        _
      // Predicated region
      $region29: #{unet_up_conv.3} parent=11 // pred_check
        %p223 = pneg %p170
      $region30: #{unet_up_conv.3} parent=11 // pred_check_branch
        %225 = sbr.rel (%p223) target = $region32
      $region31: #{unet_up_conv.3} parent=11 // pred_region
        _
      $region32: #{unet_up_conv.3} parent=11 // pred_fallthru
        _
    $region12: #{unet_up_conv.3} parent=5 // pred_fallthru
      _
    %p226 = scmp.lt.s32.totalorder %s13, 2
    // Predicated region
    $region33: #{unet_up_conv.3} parent=5 // pred_check
      %p227 = pneg %p226
    $region34: #{unet_up_conv.3} parent=5 // pred_check_branch
      %229 = sbr.rel (%p227) target = $region36
    $region35: #{unet_up_conv.3} parent=5 // pred_region
      // Predicated region
      $region37: #{unet_up_conv.3} parent=35 // pred_check
        %p230 = pneg %p33
      $region38: #{unet_up_conv.3} parent=35 // pred_check_branch
        %232 = sbr.rel (%p230) target = $region40
      $region39: #{unet_up_conv.3} parent=35 // pred_region
        %p233 = scmp.lt.s32.totalorder %s13, 1
        %s234 = scalar_select %p233, %s13, 1
        %s235 = smul.addr %s234, 3
        %s236 = smul.addr %s235, 2
        %s237 = scalar_lea.vmem %s0, %s236
      $region40: #{unet_up_conv.3} parent=35 // pred_fallthru
        _
      // Predicated region
      $region41: #{unet_up_conv.3} parent=35 // pred_check
        %p238 = pneg %p59
      $region42: #{unet_up_conv.3} parent=35 // pred_check_branch
        %240 = sbr.rel (%p238) target = $region44
      $region43: #{unet_up_conv.3} parent=35 // pred_region
        %p241 = scmp.lt.s32.totalorder %s13, 1
        %s242 = scalar_select %p241, %s13, 1
        %s243 = smul.addr %s242, 3
        %s244 = smul.addr %s243, 2
        %s245 = scalar_lea.vmem %s1, %s244
      $region44: #{unet_up_conv.3} parent=35 // pred_fallthru
        _
    $region36: #{unet_up_conv.3} parent=5 // pred_fallthru
      _
    %p246 = scmp.le.s32.totalorder 1, %s13
    %p247 = scmp.lt.s32.totalorder %s13, 3
    %p248 = pnand %p246, %p247
    %p249 = pneg %p248
    // Predicated region
    $region45: #{unet_up_conv.3} parent=5 // pred_check
      _
    $region46: #{unet_up_conv.3} parent=5 // pred_check_branch
      %251 = sbr.rel (%p248) target = $region48
    $region47: #{unet_up_conv.3} parent=5 // pred_region
      %s252 = ssub.s32 %s13, 1
      %p253 = scmp.lt.s32.totalorder %s18, 1
      %s254 = scalar_select %p253, %s18, 1
      %s255 = smul.addr %s254, 3
      %s256 = smul.addr %s255, 2
      %s257 = scalar_lea.vmem %s0, %s256
      %p258 = pneg %p39
      %p259 = pneg %p36
      %p260 = scmp.lt.s32.totalorder %s18, 1
      %s261 = scalar_select %p260, %s18, 1
      %s262 = smul.addr %s261, 3
      %s263 = smul.addr %s262, 2
      %s264 = scalar_lea.vmem %s1, %s263
      %p265 = pneg %p65
      %p266 = pneg %p62
      %p267 = pneg %p86
      %p268 = pneg %p83
      %p269 = pneg %p107
      %p270 = pneg %p104
      %p271 = pneg %p128
      %p272 = pneg %p125
      %p273 = pneg %p149
      %p274 = pneg %p146
      %p275 = pneg %p170
      %p276 = pneg %p167
      %p277 = pneg %p196
      %p278 = pneg %p193
      %p279 = scmp.lt.s32.totalorder %s18, 1
      %s280 = scalar_select %p279, %s18, 1
      %s281 = smul.addr %s280, 3
      %s282 = smul.addr %s281, 4
      %s283 = scalar_lea.vmem %s7, %s282
      %p284 = scmp.lt.s32.totalorder %s18, 1
      %s285 = scalar_select %p284, %s18, 1
      %s286 = smul.addr %s285, 3
      %s287 = smul.addr %s286, 2
      %s288 = scalar_lea.vmem %s0, %s287
      %p289 = scmp.lt.s32.totalorder %s18, 1
      %s290 = scalar_select %p289, %s18, 1
      %s291 = smul.addr %s290, 3
      %s292 = smul.addr %s291, 2
      %s293 = scalar_lea.vmem %s1, %s292
      %p294 = scmp.lt.s32.totalorder %s18, 1
      %s295 = scalar_select %p294, %s18, 1
      %s296 = smul.addr %s295, 3
      %s297 = smul.addr %s296, 4
      %s298 = scalar_lea.vmem %s7, %s297
      %v299 = vld [vmem:[%s6] sm:$0x7]
      %v300 = vld [vmem:[%s288] sm:$0x3f]
      %v301 = vunpack.c.l.bf16 %v300
      %v302 = vunpack.c.h.bf16 %v300
      %v303 = vld [vmem:[%s293] sm:$0x3f]
      %v304 = vunpack.c.l.bf16 %v303
      %v305 = vunpack.c.h.bf16 %v303
      %307 = vrot.lane.b32.xlu0 %v302, 79
      %v308 = vpop.permute.xlu0 %307
      %v311 = vcombine.high %v301, %v301
      %312 = vrot.lane.b32.xlu0 %v301, 19
      %v313 = vpop.permute.xlu0 %312
      %314 = vrot.lane.b32.xlu0 %v311, 19
      %v315 = vpop.permute.xlu0 %314
      %316 = vrot.lane.b32.xlu0 %v302, 19
      %v317 = vpop.permute.xlu0 %316
      %vm318 = vcmask 154624
      %v319 = vsel %vm318, %v313, %v315
      %v320 = vsel %vm318, %v315, %v317
      %v324 = vsel %vm318, %v308, %v313
      %325 = vst [vmem:[#allocation2] sm:$0xf] %v324
      %326 = vst [vmem:[#allocation2 + $0x8] sm:$0xf] %v319
      %vm327 = vcmask 551936
      %328 = vst.msk [vmem:[#allocation2 + $0x10] sm:$0xf] %vm327, %v320
      %330 = vrot.lane.b32.xlu0 %v305, 79
      %v331 = vpop.permute.xlu0 %330
      %v334 = vcombine.high %v304, %v304
      %335 = vrot.lane.b32.xlu0 %v304, 19
      %v336 = vpop.permute.xlu0 %335
      %337 = vrot.lane.b32.xlu0 %v334, 19
      %v338 = vpop.permute.xlu0 %337
      %339 = vrot.lane.b32.xlu0 %v305, 19
      %v340 = vpop.permute.xlu0 %339
      %v341 = vsel %vm318, %v336, %v338
      %v342 = vsel %vm318, %v338, %v340
      %v344 = vsel %vm318, %v331, %v336
      %v346 = vrot.slane %v344, 4
      %v347 = vrot.slane %v341, 4
      %v348 = vrot.slane %v342, 4
      %352 = vst [vmem:[#allocation2] sm:$0xf0] %v346
      %353 = vst [vmem:[#allocation2 + $0x8] sm:$0xf0] %v347
      %vm354 = vcmask 556036
      %355 = vst.msk [vmem:[#allocation2 + $0x10] sm:$0xf0] %vm354, %v348
      %356 = vrot.lane.b32.xlu0 %v302, 78
      %v357 = vpop.permute.xlu0 %356
      %359 = vrot.lane.b32.xlu0 %v301, 18
      %v360 = vpop.permute.xlu0 %359
      %361 = vrot.lane.b32.xlu0 %v311, 18
      %v362 = vpop.permute.xlu0 %361
      %363 = vrot.lane.b32.xlu0 %v302, 18
      %v364 = vpop.permute.xlu0 %363
      %vm365 = vcmask 146432
      %v366 = vsel %vm365, %v360, %v362
      %v367 = vsel %vm365, %v362, %v364
      %v371 = vsel %vm365, %v357, %v360
      %372 = vst [vmem:[#allocation2 + $0x18] sm:$0xf] %v371
      %373 = vst [vmem:[#allocation2 + $0x20] sm:$0xf] %v366
      %374 = vst.msk [vmem:[#allocation2 + $0x28] sm:$0xf] %vm327, %v367
      %375 = vrot.lane.b32.xlu0 %v305, 78
      %v376 = vpop.permute.xlu0 %375
      %378 = vrot.lane.b32.xlu0 %v304, 18
      %v379 = vpop.permute.xlu0 %378
      %380 = vrot.lane.b32.xlu0 %v334, 18
      %v381 = vpop.permute.xlu0 %380
      %382 = vrot.lane.b32.xlu0 %v305, 18
      %v383 = vpop.permute.xlu0 %382
      %v384 = vsel %vm365, %v379, %v381
      %v385 = vsel %vm365, %v381, %v383
      %v387 = vsel %vm365, %v376, %v379
      %v389 = vrot.slane %v387, 4
      %v390 = vrot.slane %v384, 4
      %v391 = vrot.slane %v385, 4
      %395 = vst [vmem:[#allocation2 + $0x18] sm:$0xf0] %v389
      %396 = vst [vmem:[#allocation2 + $0x20] sm:$0xf0] %v390
      %397 = vst.msk [vmem:[#allocation2 + $0x28] sm:$0xf0] %vm354, %v391
      %398 = vrot.lane.b32.xlu0 %v302, 77
      %v399 = vpop.permute.xlu0 %398
      %401 = vrot.lane.b32.xlu0 %v301, 17
      %v402 = vpop.permute.xlu0 %401
      %403 = vrot.lane.b32.xlu0 %v311, 17
      %v404 = vpop.permute.xlu0 %403
      %405 = vrot.lane.b32.xlu0 %v302, 17
      %v406 = vpop.permute.xlu0 %405
      %vm407 = vcmask 138240
      %v408 = vsel %vm407, %v402, %v404
      %v409 = vsel %vm407, %v404, %v406
      %v413 = vsel %vm407, %v399, %v402
      %414 = vst [vmem:[#allocation2 + $0x30] sm:$0xf] %v413
      %415 = vst [vmem:[#allocation2 + $0x38] sm:$0xf] %v408
      %416 = vst.msk [vmem:[#allocation2 + $0x40] sm:$0xf] %vm327, %v409
      %417 = vrot.lane.b32.xlu0 %v305, 77
      %v418 = vpop.permute.xlu0 %417
      %420 = vrot.lane.b32.xlu0 %v304, 17
      %v421 = vpop.permute.xlu0 %420
      %422 = vrot.lane.b32.xlu0 %v334, 17
      %v423 = vpop.permute.xlu0 %422
      %424 = vrot.lane.b32.xlu0 %v305, 17
      %v425 = vpop.permute.xlu0 %424
      %v426 = vsel %vm407, %v421, %v423
      %v427 = vsel %vm407, %v423, %v425
      %v429 = vsel %vm407, %v418, %v421
      %v431 = vrot.slane %v429, 4
      %v432 = vrot.slane %v426, 4
      %v433 = vrot.slane %v427, 4
      %437 = vst [vmem:[#allocation2 + $0x30] sm:$0xf0] %v431
      %438 = vst [vmem:[#allocation2 + $0x38] sm:$0xf0] %v432
      %439 = vst.msk [vmem:[#allocation2 + $0x40] sm:$0xf0] %vm354, %v433
      %440 = vrot.lane.b32.xlu0 %v302, 61
      %v441 = vpop.permute.xlu0 %440
      %443 = vrot.lane.b32.xlu0 %v301, 1
      %v444 = vpop.permute.xlu0 %443
      %445 = vrot.lane.b32.xlu0 %v311, 1
      %v446 = vpop.permute.xlu0 %445
      %447 = vrot.lane.b32.xlu0 %v302, 1
      %v448 = vpop.permute.xlu0 %447
      %vm449 = vcmask 7168
      %v450 = vsel %vm449, %v444, %v446
      %v451 = vsel %vm449, %v446, %v448
      %v455 = vsel %vm449, %v441, %v444
      %456 = vst [vmem:[#allocation2 + $0x48] sm:$0xf] %v455
      %457 = vst [vmem:[#allocation2 + $0x50] sm:$0xf] %v450
      %458 = vst.msk [vmem:[#allocation2 + $0x58] sm:$0xf] %vm327, %v451
      %459 = vrot.lane.b32.xlu0 %v305, 61
      %v460 = vpop.permute.xlu0 %459
      %462 = vrot.lane.b32.xlu0 %v304, 1
      %v463 = vpop.permute.xlu0 %462
      %464 = vrot.lane.b32.xlu0 %v334, 1
      %v465 = vpop.permute.xlu0 %464
      %466 = vrot.lane.b32.xlu0 %v305, 1
      %v467 = vpop.permute.xlu0 %466
      %v468 = vsel %vm449, %v463, %v465
      %v469 = vsel %vm449, %v465, %v467
      %v471 = vsel %vm449, %v460, %v463
      %v473 = vrot.slane %v471, 4
      %v474 = vrot.slane %v468, 4
      %v475 = vrot.slane %v469, 4
      %479 = vst [vmem:[#allocation2 + $0x48] sm:$0xf0] %v473
      %480 = vst [vmem:[#allocation2 + $0x50] sm:$0xf0] %v474
      %481 = vst.msk [vmem:[#allocation2 + $0x58] sm:$0xf0] %vm354, %v475
      %483 = vst [vmem:[#allocation2 + $0x60] sm:$0xf] %v301
      %484 = vst [vmem:[#allocation2 + $0x68] sm:$0xf] %v311
      %485 = vst.msk [vmem:[#allocation2 + $0x70] sm:$0xf] %vm327, %v302
      %v486 = vcombine.low %v304, %v304
      %v487 = vcombine.low %v305, %v305
      %490 = vst [vmem:[#allocation2 + $0x60] sm:$0xf0] %v486
      %491 = vst [vmem:[#allocation2 + $0x68] sm:$0xf0] %v304
      %492 = vst.msk [vmem:[#allocation2 + $0x70] sm:$0xf0] %vm354, %v487
      %493 = vrot.lane.b32.xlu0 %v301, 127
      %v494 = vpop.permute.xlu0 %493
      %495 = vrot.lane.b32.xlu0 %v311, 127
      %v496 = vpop.permute.xlu0 %495
      %497 = vrot.lane.b32.xlu0 %v302, 127
      %v498 = vpop.permute.xlu0 %497
      %vm499 = vcmask 1039360
      %v500 = vsel %vm499, %v494, %v496
      %v501 = vsel %vm499, %v496, %v498
      %505 = vrot.lane.b32.xlu0 %v301, 67
      %v506 = vpop.permute.xlu0 %505
      %vm508 = vcmask 547840
      %v509 = vsel %vm508, %v498, %v506
      %510 = vst [vmem:[#allocation2 + $0x78] sm:$0xf] %v500
      %511 = vst [vmem:[#allocation2 + $0x80] sm:$0xf] %v501
      %512 = vst.msk [vmem:[#allocation2 + $0x88] sm:$0xf] %vm327, %v509
      %513 = vrot.lane.b32.xlu0 %v304, 127
      %v514 = vpop.permute.xlu0 %513
      %515 = vrot.lane.b32.xlu0 %v334, 127
      %v516 = vpop.permute.xlu0 %515
      %517 = vrot.lane.b32.xlu0 %v305, 127
      %v518 = vpop.permute.xlu0 %517
      %v519 = vsel %vm499, %v514, %v516
      %v520 = vsel %vm499, %v516, %v518
      %522 = vrot.lane.b32.xlu0 %v304, 67
      %v523 = vpop.permute.xlu0 %522
      %v525 = vsel %vm508, %v518, %v523
      %v527 = vrot.slane %v519, 4
      %v528 = vrot.slane %v520, 4
      %v529 = vrot.slane %v525, 4
      %533 = vst [vmem:[#allocation2 + $0x78] sm:$0xf0] %v527
      %534 = vst [vmem:[#allocation2 + $0x80] sm:$0xf0] %v528
      %535 = vst.msk [vmem:[#allocation2 + $0x88] sm:$0xf0] %vm354, %v529
      %536 = vrot.lane.b32.xlu0 %v301, 111
      %v537 = vpop.permute.xlu0 %536
      %538 = vrot.lane.b32.xlu0 %v311, 111
      %v539 = vpop.permute.xlu0 %538
      %540 = vrot.lane.b32.xlu0 %v302, 111
      %v541 = vpop.permute.xlu0 %540
      %vm542 = vcmask 908288
      %v543 = vsel %vm542, %v537, %v539
      %v544 = vsel %vm542, %v539, %v541
      %548 = vrot.lane.b32.xlu0 %v301, 51
      %v549 = vpop.permute.xlu0 %548
      %vm551 = vcmask 416768
      %v552 = vsel %vm551, %v541, %v549
      %553 = vst [vmem:[#allocation2 + $0x90] sm:$0xf] %v543
      %554 = vst [vmem:[#allocation2 + $0x98] sm:$0xf] %v544
      %555 = vst.msk [vmem:[#allocation2 + $0xa0] sm:$0xf] %vm327, %v552
      %556 = vrot.lane.b32.xlu0 %v304, 111
      %v557 = vpop.permute.xlu0 %556
      %558 = vrot.lane.b32.xlu0 %v334, 111
      %v559 = vpop.permute.xlu0 %558
      %560 = vrot.lane.b32.xlu0 %v305, 111
      %v561 = vpop.permute.xlu0 %560
      %v562 = vsel %vm542, %v557, %v559
      %v563 = vsel %vm542, %v559, %v561
      %565 = vrot.lane.b32.xlu0 %v304, 51
      %v566 = vpop.permute.xlu0 %565
      %v568 = vsel %vm551, %v561, %v566
      %v570 = vrot.slane %v562, 4
      %v571 = vrot.slane %v563, 4
      %v572 = vrot.slane %v568, 4
      %576 = vst [vmem:[#allocation2 + $0x90] sm:$0xf0] %v570
      %577 = vst [vmem:[#allocation2 + $0x98] sm:$0xf0] %v571
      %578 = vst.msk [vmem:[#allocation2 + $0xa0] sm:$0xf0] %vm354, %v572
      %579 = vrot.lane.b32.xlu0 %v301, 110
      %v580 = vpop.permute.xlu0 %579
      %581 = vrot.lane.b32.xlu0 %v311, 110
      %v582 = vpop.permute.xlu0 %581
      %583 = vrot.lane.b32.xlu0 %v302, 110
      %v584 = vpop.permute.xlu0 %583
      %vm585 = vcmask 900096
      %v586 = vsel %vm585, %v580, %v582
      %v587 = vsel %vm585, %v582, %v584
      %591 = vrot.lane.b32.xlu0 %v301, 50
      %v592 = vpop.permute.xlu0 %591
      %vm594 = vcmask 408576
      %v595 = vsel %vm594, %v584, %v592
      %596 = vst [vmem:[#allocation2 + $0xa8] sm:$0xf] %v586
      %597 = vst [vmem:[#allocation2 + $0xb0] sm:$0xf] %v587
      %598 = vst.msk [vmem:[#allocation2 + $0xb8] sm:$0xf] %vm327, %v595
      %599 = vrot.lane.b32.xlu0 %v304, 110
      %v600 = vpop.permute.xlu0 %599
      %601 = vrot.lane.b32.xlu0 %v334, 110
      %v602 = vpop.permute.xlu0 %601
      %603 = vrot.lane.b32.xlu0 %v305, 110
      %v604 = vpop.permute.xlu0 %603
      %v605 = vsel %vm585, %v600, %v602
      %v606 = vsel %vm585, %v602, %v604
      %608 = vrot.lane.b32.xlu0 %v304, 50
      %v609 = vpop.permute.xlu0 %608
      %v611 = vsel %vm594, %v604, %v609
      %v613 = vrot.slane %v605, 4
      %v614 = vrot.slane %v606, 4
      %v615 = vrot.slane %v611, 4
      %619 = vst [vmem:[#allocation2 + $0xa8] sm:$0xf0] %v613
      %620 = vst [vmem:[#allocation2 + $0xb0] sm:$0xf0] %v614
      %621 = vst.msk [vmem:[#allocation2 + $0xb8] sm:$0xf0] %vm354, %v615
      %622 = vrot.lane.b32.xlu0 %v301, 109
      %v623 = vpop.permute.xlu0 %622
      %624 = vrot.lane.b32.xlu0 %v311, 109
      %v625 = vpop.permute.xlu0 %624
      %626 = vrot.lane.b32.xlu0 %v302, 109
      %v627 = vpop.permute.xlu0 %626
      %vm628 = vcmask 891904
      %v629 = vsel %vm628, %v623, %v625
      %v630 = vsel %vm628, %v625, %v627
      %634 = vrot.lane.b32.xlu0 %v301, 49
      %v635 = vpop.permute.xlu0 %634
      %vm637 = vcmask 400384
      %v638 = vsel %vm637, %v627, %v635
      %639 = vst [vmem:[#allocation2 + $0xc0] sm:$0xf] %v629
      %640 = vst [vmem:[#allocation2 + $0xc8] sm:$0xf] %v630
      %641 = vst.msk [vmem:[#allocation2 + $0xd0] sm:$0xf] %vm327, %v638
      %642 = vrot.lane.b32.xlu0 %v304, 109
      %v643 = vpop.permute.xlu0 %642
      %644 = vrot.lane.b32.xlu0 %v334, 109
      %v645 = vpop.permute.xlu0 %644
      %646 = vrot.lane.b32.xlu0 %v305, 109
      %v647 = vpop.permute.xlu0 %646
      %v648 = vsel %vm628, %v643, %v645
      %v649 = vsel %vm628, %v645, %v647
      %651 = vrot.lane.b32.xlu0 %v304, 49
      %v652 = vpop.permute.xlu0 %651
      %v654 = vsel %vm637, %v647, %v652
      %v656 = vrot.slane %v648, 4
      %v657 = vrot.slane %v649, 4
      %v658 = vrot.slane %v654, 4
      %662 = vst [vmem:[#allocation2 + $0xc0] sm:$0xf0] %v656
      %663 = vst [vmem:[#allocation2 + $0xc8] sm:$0xf0] %v657
      %664 = vst.msk [vmem:[#allocation2 + $0xd0] sm:$0xf0] %vm354, %v658
      %v665 = vld [vmem:[%s2] sm:$0xf]
      %v666 = vld [vmem:[#allocation2] sm:$0xff]
      %v667 = vld [vmem:[#allocation2 + $0x8] sm:$0xff]
      %v668 = vld [vmem:[#allocation2 + $0x10] sm:$0xff]
      %v669 = vld [vmem:[#allocation2 + $0x18] sm:$0xff]
      %v670 = vld [vmem:[#allocation2 + $0x20] sm:$0xff]
      %v671 = vld [vmem:[#allocation2 + $0x28] sm:$0xff]
      %v672 = vld [vmem:[#allocation2 + $0x30] sm:$0xff]
      %v673 = vld [vmem:[#allocation2 + $0x38] sm:$0xff]
      %v674 = vld [vmem:[#allocation2 + $0x40] sm:$0xff]
      %v675 = vld [vmem:[#allocation2 + $0x48] sm:$0xff]
      %v676 = vld [vmem:[#allocation2 + $0x50] sm:$0xff]
      %v677 = vld [vmem:[#allocation2 + $0x58] sm:$0xff]
      %v678 = vld [vmem:[#allocation2 + $0x60] sm:$0xff]
      %v679 = vld [vmem:[#allocation2 + $0x68] sm:$0xff]
      %v680 = vld [vmem:[#allocation2 + $0x70] sm:$0xff]
      %v681 = vld [vmem:[#allocation2 + $0x78] sm:$0xff]
      %v682 = vld [vmem:[#allocation2 + $0x80] sm:$0xff]
      %v683 = vld [vmem:[#allocation2 + $0x88] sm:$0xff]
      %v684 = vld [vmem:[#allocation2 + $0x90] sm:$0xff]
      %v685 = vld [vmem:[#allocation2 + $0x98] sm:$0xff]
      %v686 = vld [vmem:[#allocation2 + $0xa0] sm:$0xff]
      %v687 = vld [vmem:[#allocation2 + $0xa8] sm:$0xff]
      %v688 = vld [vmem:[#allocation2 + $0xb0] sm:$0xff]
      %v689 = vld [vmem:[#allocation2 + $0xb8] sm:$0xff]
      %v690 = vld [vmem:[#allocation2 + $0xc0] sm:$0xff]
      %v691 = vld [vmem:[#allocation2 + $0xc8] sm:$0xff]
      %v692 = vld [vmem:[#allocation2 + $0xd0] sm:$0xff]
      %v693 = vld [vmem:[%s3] sm:$0xf]
      %695 = vset.pattern.permute.xlu0 0
      %696 = vperm.xlu0 %695, %v693
      %v697 = vpop.permute.xlu0 %696
      %vm699 = vcmask 588800
      %v701 = vsel %vm699, %v665, 0
      %703 = vmatprep.subr.mxu0 %v667
      %704 = vmatpush1.msra.mxu0 %v666
      %705 = vmatprep.subr.mxu0 %v670
      %706 = vmatpush1.msra.mxu0 %v669
      %707 = vmatprep.subr.mxu0 %v673
      %708 = vmatpush1.msra.mxu0 %v672
      %709 = vmatprep.subr.mxu0 %v676
      %710 = vmatpush1.msra.mxu0 %v675
      %711 = vmatprep.subr.mxu0 %v679
      %712 = vmatpush1.msra.mxu0 %v678
      %713 = vmatprep.subr.mxu0 %v682
      %714 = vmatpush1.msra.mxu0 %v681
      %715 = vmatprep.subr.mxu0 %v685
      %716 = vmatpush1.msra.mxu0 %v684
      %717 = vmatprep.subr.mxu0 %v688
      %718 = vmatpush1.msra.mxu0 %v687
      %719 = vmatprep.subr.mxu0 %v691
      %720 = vmatpush1.msra.mxu0 %v690
      %721 = vmatprep.subr.mxu0 0.0
      %722 = vmatpush1.msra.mxu0 0.0
      %723 = vmatprep.subr.mxu0 0.0
      %724 = vmatpush1.msra.mxu0 0.0
      %725 = vmatprep.subr.mxu0 0.0
      %726 = vmatpush1.msra.mxu0 0.0
      %727 = vmatprep.subr.mxu0 0.0
      %728 = vmatpush1.msra.mxu0 0.0
      %729 = vmatprep.subr.mxu0 0.0
      %730 = vmatpush1.msra.mxu0 0.0
      %731 = vmatprep.subr.mxu0 0.0
      %732 = vmatpush1.msra.mxu0 0.0
      %733 = vmatprep.subr.mxu0 0.0
      %734 = vmatpush1.msra.mxu0 0.0
      %735 = vmatprep.subr.mxu0 0.0
      %736 = vmatpush1.msra.mxu0 0.0
      %737 = vmatprep.subr.mxu0 0.0
      %738 = vmatpush1.msra.mxu0 0.0
      %739 = vmatprep.subr.mxu0 0.0
      %740 = vmatpush1.msra.mxu0 0.0
      %741 = vmatprep.subr.mxu0 0.0
      %742 = vmatpush1.msra.mxu0 0.0
      %743 = vmatprep.subr.mxu0 0.0
      %744 = vmatpush1.msra.mxu0 0.0
      %745 = vmatprep.subr.mxu0 0.0
      %746 = vmatpush1.msra.mxu0 0.0
      %747 = vmatprep.subr.mxu0 0.0
      %748 = vmatpush1.msra.mxu0 0.0
      %749 = vmatprep.subr.mxu0 0.0
      %750 = vmatpush1.msra.mxu0 0.0
      %751 = vmatprep.subr.mxu0 0.0
      %752 = vmatpush1.msra.mxu0 0.0
      %753 = vmatprep.subr.mxu0 0.0
      %754 = vmatpush1.msra.mxu0 0.0
      %755 = vmatprep.subr.mxu0 0.0
      %756 = vmatpush1.msra.mxu0 0.0
      %757 = vmatprep.subr.mxu0 0.0
      %758 = vmatpush1.msra.mxu0 0.0
      %759 = vmatprep.subr.mxu0 0.0
      %760 = vmatpush1.msra.mxu0 0.0
      %761 = vmatprep.subr.mxu0 0.0
      %762 = vmatpush1.msra.mxu0 0.0
      %763 = vmatprep.subr.mxu0 0.0
      %764 = vmatpush1.msra.mxu0 0.0
      %765 = vmatprep.subr.mxu0 0.0
      %766 = vmatpush1.msra.mxu0 0.0
      %767 = vmatprep.mubr.f32.mxu0 0.0
      %768 = vmatmul.mubr.f32.gmra.mrb[0].mxu0 %v701
      %v769 = vpop.f32.mrb[0].mxu0
      %v770 = vadd.f32 %v697, %v769
      %v771 = vpop.f32.mrb[0].mxu0
      %v772 = vadd.f32 %v697, %v771
      %773 = vdwg.mxu0
      %774 = vmatprep.subr.mxu0 0.0
      %775 = vmatpush1.msra.mxu0 %v668
      %776 = vmatprep.subr.mxu0 0.0
      %777 = vmatpush1.msra.mxu0 %v671
      %778 = vmatprep.subr.mxu0 0.0
      %779 = vmatpush1.msra.mxu0 %v674
      %780 = vmatprep.subr.mxu0 0.0
      %781 = vmatpush1.msra.mxu0 %v677
      %782 = vmatprep.subr.mxu0 0.0
      %783 = vmatpush1.msra.mxu0 %v680
      %784 = vmatprep.subr.mxu0 0.0
      %785 = vmatpush1.msra.mxu0 %v683
      %786 = vmatprep.subr.mxu0 0.0
      %787 = vmatpush1.msra.mxu0 %v686
      %788 = vmatprep.subr.mxu0 0.0
      %789 = vmatpush1.msra.mxu0 %v689
      %790 = vmatprep.subr.mxu0 0.0
      %791 = vmatpush1.msra.mxu0 %v692
      %792 = vmatprep.subr.mxu0 0.0
      %793 = vmatpush1.msra.mxu0 0.0
      %794 = vmatprep.subr.mxu0 0.0
      %795 = vmatpush1.msra.mxu0 0.0
      %796 = vmatprep.subr.mxu0 0.0
      %797 = vmatpush1.msra.mxu0 0.0
      %798 = vmatprep.subr.mxu0 0.0
      %799 = vmatpush1.msra.mxu0 0.0
      %800 = vmatprep.subr.mxu0 0.0
      %801 = vmatpush1.msra.mxu0 0.0
      %802 = vmatprep.subr.mxu0 0.0
      %803 = vmatpush1.msra.mxu0 0.0
      %804 = vmatprep.subr.mxu0 0.0
      %805 = vmatpush1.msra.mxu0 0.0
      %806 = vmatprep.subr.mxu0 0.0
      %807 = vmatpush1.msra.mxu0 0.0
      %808 = vmatprep.subr.mxu0 0.0
      %809 = vmatpush1.msra.mxu0 0.0
      %810 = vmatprep.subr.mxu0 0.0
      %811 = vmatpush1.msra.mxu0 0.0
      %812 = vmatprep.subr.mxu0 0.0
      %813 = vmatpush1.msra.mxu0 0.0
      %814 = vmatprep.subr.mxu0 0.0
      %815 = vmatpush1.msra.mxu0 0.0
      %816 = vmatprep.subr.mxu0 0.0
      %817 = vmatpush1.msra.mxu0 0.0
      %818 = vmatprep.subr.mxu0 0.0
      %819 = vmatpush1.msra.mxu0 0.0
      %820 = vmatprep.subr.mxu0 0.0
      %821 = vmatpush1.msra.mxu0 0.0
      %822 = vmatprep.subr.mxu0 0.0
      %823 = vmatpush1.msra.mxu0 0.0
      %824 = vmatprep.subr.mxu0 0.0
      %825 = vmatpush1.msra.mxu0 0.0
      %826 = vmatprep.subr.mxu0 0.0
      %827 = vmatpush1.msra.mxu0 0.0
      %828 = vmatprep.subr.mxu0 0.0
      %829 = vmatpush1.msra.mxu0 0.0
      %830 = vmatprep.subr.mxu0 0.0
      %831 = vmatpush1.msra.mxu0 0.0
      %832 = vmatprep.subr.mxu0 0.0
      %833 = vmatpush1.msra.mxu0 0.0
      %834 = vmatprep.subr.mxu0 0.0
      %835 = vmatpush1.msra.mxu0 0.0
      %836 = vmatprep.subr.mxu0 0.0
      %837 = vmatpush1.msra.mxu0 0.0
      %838 = vmatprep.mubr.f32.mxu0 0.0
      %839 = vmatmul.mubr.f32.gmra.mrb[0].mxu0 %v701
      %v840 = vpop.f32.mrb[0].mxu0
      %v841 = vadd.f32 %v697, %v840
      %v842 = vpop.f32.mrb[0].mxu0
      %843 = vdwg.mxu0
      %v844 = vmax.f32 %v770, 0.0
      %v845 = vmax.f32 %v772, 0.0
      %v846 = vmax.f32 %v841, 0.0
      %v848 = vlaneseq
      %v849 = vshrl.u32 %v848, 7
      %v850 = vsub.s32 0, %v849
      %v851 = vrot.slane %v299, %v850
      %v852 = vlaneseq
      %v853 = vshrl.u32 %v852, 7
      %v854 = vsub.s32 1, %v853
      %v855 = vrot.slane %v299, %v854
      %v856 = vlaneseq
      %v857 = vshrl.u32 %v856, 7
      %v858 = vsub.s32 2, %v857
      %v859 = vrot.slane %v299, %v858
      %v863 = vmul.f32 %v844, %v851
      %v864 = vmul.f32 %v845, %v855
      %v865 = vmul.f32 %v846, %v859
      %867 = vrot.lane.b32.xlu0 %v865, 79
      %v868 = vpop.permute.xlu0 %867
      %872 = vrot.lane.b32.xlu0 %v863, 19
      %v873 = vpop.permute.xlu0 %872
      %874 = vrot.lane.b32.xlu0 %v864, 19
      %v875 = vpop.permute.xlu0 %874
      %876 = vrot.lane.b32.xlu0 %v865, 19
      %v877 = vpop.permute.xlu0 %876
      %v878 = vsel %vm318, %v873, %v875
      %v879 = vsel %vm318, %v875, %v877
      %v883 = vsel %vm318, %v868, %v873
      %884 = vst [vmem:[#allocation2] sm:$0xf] %v883
      %885 = vst [vmem:[#allocation2 + $0x8] sm:$0xf] %v878
      %886 = vst.msk [vmem:[#allocation2 + $0x10] sm:$0xf] %vm327, %v879
      %887 = vrot.lane.b32.xlu0 %v865, 78
      %v888 = vpop.permute.xlu0 %887
      %890 = vrot.lane.b32.xlu0 %v863, 18
      %v891 = vpop.permute.xlu0 %890
      %892 = vrot.lane.b32.xlu0 %v864, 18
      %v893 = vpop.permute.xlu0 %892
      %894 = vrot.lane.b32.xlu0 %v865, 18
      %v895 = vpop.permute.xlu0 %894
      %v896 = vsel %vm365, %v891, %v893
      %v897 = vsel %vm365, %v893, %v895
      %v901 = vsel %vm365, %v888, %v891
      %902 = vst [vmem:[#allocation2 + $0x18] sm:$0xf] %v901
      %903 = vst [vmem:[#allocation2 + $0x20] sm:$0xf] %v896
      %904 = vst.msk [vmem:[#allocation2 + $0x28] sm:$0xf] %vm327, %v897
      %905 = vrot.lane.b32.xlu0 %v865, 77
      %v906 = vpop.permute.xlu0 %905
      %908 = vrot.lane.b32.xlu0 %v863, 17
      %v909 = vpop.permute.xlu0 %908
      %910 = vrot.lane.b32.xlu0 %v864, 17
      %v911 = vpop.permute.xlu0 %910
      %912 = vrot.lane.b32.xlu0 %v865, 17
      %v913 = vpop.permute.xlu0 %912
      %v914 = vsel %vm407, %v909, %v911
      %v915 = vsel %vm407, %v911, %v913
      %v919 = vsel %vm407, %v906, %v909
      %920 = vst [vmem:[#allocation2 + $0x30] sm:$0xf] %v919
      %921 = vst [vmem:[#allocation2 + $0x38] sm:$0xf] %v914
      %922 = vst.msk [vmem:[#allocation2 + $0x40] sm:$0xf] %vm327, %v915
      %923 = vrot.lane.b32.xlu0 %v865, 61
      %v924 = vpop.permute.xlu0 %923
      %926 = vrot.lane.b32.xlu0 %v863, 1
      %v927 = vpop.permute.xlu0 %926
      %928 = vrot.lane.b32.xlu0 %v864, 1
      %v929 = vpop.permute.xlu0 %928
      %930 = vrot.lane.b32.xlu0 %v865, 1
      %v931 = vpop.permute.xlu0 %930
      %v932 = vsel %vm449, %v927, %v929
      %v933 = vsel %vm449, %v929, %v931
      %v937 = vsel %vm449, %v924, %v927
      %938 = vst [vmem:[#allocation2 + $0x48] sm:$0xf] %v937
      %939 = vst [vmem:[#allocation2 + $0x50] sm:$0xf] %v932
      %940 = vst.msk [vmem:[#allocation2 + $0x58] sm:$0xf] %vm327, %v933
      %941 = vst [vmem:[#allocation2 + $0x60] sm:$0xf] %v863
      %942 = vst [vmem:[#allocation2 + $0x68] sm:$0xf] %v864
      %943 = vst.msk [vmem:[#allocation2 + $0x70] sm:$0xf] %vm327, %v865
      %944 = vrot.lane.b32.xlu0 %v863, 127
      %v945 = vpop.permute.xlu0 %944
      %946 = vrot.lane.b32.xlu0 %v864, 127
      %v947 = vpop.permute.xlu0 %946
      %948 = vrot.lane.b32.xlu0 %v865, 127
      %v949 = vpop.permute.xlu0 %948
      %v950 = vsel %vm499, %v945, %v947
      %v951 = vsel %vm499, %v947, %v949
      %955 = vrot.lane.b32.xlu0 %v863, 67
      %v956 = vpop.permute.xlu0 %955
      %v958 = vsel %vm508, %v949, %v956
      %959 = vst [vmem:[#allocation2 + $0x78] sm:$0xf] %v950
      %960 = vst [vmem:[#allocation2 + $0x80] sm:$0xf] %v951
      %961 = vst.msk [vmem:[#allocation2 + $0x88] sm:$0xf] %vm327, %v958
      %962 = vrot.lane.b32.xlu0 %v863, 111
      %v963 = vpop.permute.xlu0 %962
      %964 = vrot.lane.b32.xlu0 %v864, 111
      %v965 = vpop.permute.xlu0 %964
      %966 = vrot.lane.b32.xlu0 %v865, 111
      %v967 = vpop.permute.xlu0 %966
      %v968 = vsel %vm542, %v963, %v965
      %v969 = vsel %vm542, %v965, %v967
      %973 = vrot.lane.b32.xlu0 %v863, 51
      %v974 = vpop.permute.xlu0 %973
      %v976 = vsel %vm551, %v967, %v974
      %977 = vst [vmem:[#allocation2 + $0x90] sm:$0xf] %v968
      %978 = vst [vmem:[#allocation2 + $0x98] sm:$0xf] %v969
      %979 = vst.msk [vmem:[#allocation2 + $0xa0] sm:$0xf] %vm327, %v976
      %980 = vrot.lane.b32.xlu0 %v863, 110
      %v981 = vpop.permute.xlu0 %980
      %982 = vrot.lane.b32.xlu0 %v864, 110
      %v983 = vpop.permute.xlu0 %982
      %984 = vrot.lane.b32.xlu0 %v865, 110
      %v985 = vpop.permute.xlu0 %984
      %v986 = vsel %vm585, %v981, %v983
      %v987 = vsel %vm585, %v983, %v985
      %991 = vrot.lane.b32.xlu0 %v863, 50
      %v992 = vpop.permute.xlu0 %991
      %v994 = vsel %vm594, %v985, %v992
      %995 = vst [vmem:[#allocation2 + $0xa8] sm:$0xf] %v986
      %996 = vst [vmem:[#allocation2 + $0xb0] sm:$0xf] %v987
      %997 = vst.msk [vmem:[#allocation2 + $0xb8] sm:$0xf] %vm327, %v994
      %998 = vrot.lane.b32.xlu0 %v863, 109
      %v999 = vpop.permute.xlu0 %998
      %1000 = vrot.lane.b32.xlu0 %v864, 109
      %v1001 = vpop.permute.xlu0 %1000
      %1002 = vrot.lane.b32.xlu0 %v865, 109
      %v1003 = vpop.permute.xlu0 %1002
      %v1004 = vsel %vm628, %v999, %v1001
      %v1005 = vsel %vm628, %v1001, %v1003
      %1009 = vrot.lane.b32.xlu0 %v863, 49
      %v1010 = vpop.permute.xlu0 %1009
      %v1012 = vsel %vm637, %v1003, %v1010
      %1013 = vst [vmem:[#allocation2 + $0xc0] sm:$0xf] %v1004
      %1014 = vst [vmem:[#allocation2 + $0xc8] sm:$0xf] %v1005
      %1015 = vst.msk [vmem:[#allocation2 + $0xd0] sm:$0xf] %vm327, %v1012
      %v1016 = vld [vmem:[%s4] sm:$0xf]
      %v1017 = vld [vmem:[#allocation2] sm:$0xff]
      %v1018 = vld [vmem:[#allocation2 + $0x8] sm:$0xff]
      %v1019 = vld [vmem:[#allocation2 + $0x10] sm:$0xff]
      %v1020 = vld [vmem:[#allocation2 + $0x18] sm:$0xff]
      %v1021 = vld [vmem:[#allocation2 + $0x20] sm:$0xff]
      %v1022 = vld [vmem:[#allocation2 + $0x28] sm:$0xff]
      %v1023 = vld [vmem:[#allocation2 + $0x30] sm:$0xff]
      %v1024 = vld [vmem:[#allocation2 + $0x38] sm:$0xff]
      %v1025 = vld [vmem:[#allocation2 + $0x40] sm:$0xff]
      %v1026 = vld [vmem:[#allocation2 + $0x48] sm:$0xff]
      %v1027 = vld [vmem:[#allocation2 + $0x50] sm:$0xff]
      %v1028 = vld [vmem:[#allocation2 + $0x58] sm:$0xff]
      %v1029 = vld [vmem:[#allocation2 + $0x60] sm:$0xff]
      %v1030 = vld [vmem:[#allocation2 + $0x68] sm:$0xff]
      %v1031 = vld [vmem:[#allocation2 + $0x70] sm:$0xff]
      %v1032 = vld [vmem:[#allocation2 + $0x78] sm:$0xff]
      %v1033 = vld [vmem:[#allocation2 + $0x80] sm:$0xff]
      %v1034 = vld [vmem:[#allocation2 + $0x88] sm:$0xff]
      %v1035 = vld [vmem:[#allocation2 + $0x90] sm:$0xff]
      %v1036 = vld [vmem:[#allocation2 + $0x98] sm:$0xff]
      %v1037 = vld [vmem:[#allocation2 + $0xa0] sm:$0xff]
      %v1038 = vld [vmem:[#allocation2 + $0xa8] sm:$0xff]
      %v1039 = vld [vmem:[#allocation2 + $0xb0] sm:$0xff]
      %v1040 = vld [vmem:[#allocation2 + $0xb8] sm:$0xff]
      %v1041 = vld [vmem:[#allocation2 + $0xc0] sm:$0xff]
      %v1042 = vld [vmem:[#allocation2 + $0xc8] sm:$0xff]
      %v1043 = vld [vmem:[#allocation2 + $0xd0] sm:$0xff]
      %v1044 = vld [vmem:[%s5] sm:$0xf]
      %1046 = vset.pattern.permute.xlu0 0
      %1047 = vperm.xlu0 %1046, %v1044
      %v1048 = vpop.permute.xlu0 %1047
      %v1051 = vsel %vm699, %v1016, 0
      %1053 = vmatprep.subr.mxu0 %v1018
      %1054 = vmatpush1.msra.mxu0 %v1017
      %1055 = vmatprep.subr.mxu0 %v1021
      %1056 = vmatpush1.msra.mxu0 %v1020
      %1057 = vmatprep.subr.mxu0 %v1024
      %1058 = vmatpush1.msra.mxu0 %v1023
      %1059 = vmatprep.subr.mxu0 %v1027
      %1060 = vmatpush1.msra.mxu0 %v1026
      %1061 = vmatprep.subr.mxu0 %v1030
      %1062 = vmatpush1.msra.mxu0 %v1029
      %1063 = vmatprep.subr.mxu0 %v1033
      %1064 = vmatpush1.msra.mxu0 %v1032
      %1065 = vmatprep.subr.mxu0 %v1036
      %1066 = vmatpush1.msra.mxu0 %v1035
      %1067 = vmatprep.subr.mxu0 %v1039
      %1068 = vmatpush1.msra.mxu0 %v1038
      %1069 = vmatprep.subr.mxu0 %v1042
      %1070 = vmatpush1.msra.mxu0 %v1041
      %1071 = vmatprep.subr.mxu0 0.0
      %1072 = vmatpush1.msra.mxu0 0.0
      %1073 = vmatprep.subr.mxu0 0.0
      %1074 = vmatpush1.msra.mxu0 0.0
      %1075 = vmatprep.subr.mxu0 0.0
      %1076 = vmatpush1.msra.mxu0 0.0
      %1077 = vmatprep.subr.mxu0 0.0
      %1078 = vmatpush1.msra.mxu0 0.0
      %1079 = vmatprep.subr.mxu0 0.0
      %1080 = vmatpush1.msra.mxu0 0.0
      %1081 = vmatprep.subr.mxu0 0.0
      %1082 = vmatpush1.msra.mxu0 0.0
      %1083 = vmatprep.subr.mxu0 0.0
      %1084 = vmatpush1.msra.mxu0 0.0
      %1085 = vmatprep.subr.mxu0 0.0
      %1086 = vmatpush1.msra.mxu0 0.0
      %1087 = vmatprep.subr.mxu0 0.0
      %1088 = vmatpush1.msra.mxu0 0.0
      %1089 = vmatprep.subr.mxu0 0.0
      %1090 = vmatpush1.msra.mxu0 0.0
      %1091 = vmatprep.subr.mxu0 0.0
      %1092 = vmatpush1.msra.mxu0 0.0
      %1093 = vmatprep.subr.mxu0 0.0
      %1094 = vmatpush1.msra.mxu0 0.0
      %1095 = vmatprep.subr.mxu0 0.0
      %1096 = vmatpush1.msra.mxu0 0.0
      %1097 = vmatprep.subr.mxu0 0.0
      %1098 = vmatpush1.msra.mxu0 0.0
      %1099 = vmatprep.subr.mxu0 0.0
      %1100 = vmatpush1.msra.mxu0 0.0
      %1101 = vmatprep.subr.mxu0 0.0
      %1102 = vmatpush1.msra.mxu0 0.0
      %1103 = vmatprep.subr.mxu0 0.0
      %1104 = vmatpush1.msra.mxu0 0.0
      %1105 = vmatprep.subr.mxu0 0.0
      %1106 = vmatpush1.msra.mxu0 0.0
      %1107 = vmatprep.subr.mxu0 0.0
      %1108 = vmatpush1.msra.mxu0 0.0
      %1109 = vmatprep.subr.mxu0 0.0
      %1110 = vmatpush1.msra.mxu0 0.0
      %1111 = vmatprep.subr.mxu0 0.0
      %1112 = vmatpush1.msra.mxu0 0.0
      %1113 = vmatprep.subr.mxu0 0.0
      %1114 = vmatpush1.msra.mxu0 0.0
      %1115 = vmatprep.subr.mxu0 0.0
      %1116 = vmatpush1.msra.mxu0 0.0
      %1117 = vmatprep.mubr.f32.mxu0 0.0
      %1118 = vmatmul.mubr.f32.gmra.mrb[0].mxu0 %v1051
      %v1119 = vpop.f32.mrb[0].mxu0
      %v1120 = vadd.f32 %v1048, %v1119
      %v1121 = vpop.f32.mrb[0].mxu0
      %v1122 = vadd.f32 %v1048, %v1121
      %1123 = vdwg.mxu0
      %1124 = vmatprep.subr.mxu0 0.0
      %1125 = vmatpush1.msra.mxu0 %v1019
      %1126 = vmatprep.subr.mxu0 0.0
      %1127 = vmatpush1.msra.mxu0 %v1022
      %1128 = vmatprep.subr.mxu0 0.0
      %1129 = vmatpush1.msra.mxu0 %v1025
      %1130 = vmatprep.subr.mxu0 0.0
      %1131 = vmatpush1.msra.mxu0 %v1028
      %1132 = vmatprep.subr.mxu0 0.0
      %1133 = vmatpush1.msra.mxu0 %v1031
      %1134 = vmatprep.subr.mxu0 0.0
      %1135 = vmatpush1.msra.mxu0 %v1034
      %1136 = vmatprep.subr.mxu0 0.0
      %1137 = vmatpush1.msra.mxu0 %v1037
      %1138 = vmatprep.subr.mxu0 0.0
      %1139 = vmatpush1.msra.mxu0 %v1040
      %1140 = vmatprep.subr.mxu0 0.0
      %1141 = vmatpush1.msra.mxu0 %v1043
      %1142 = vmatprep.subr.mxu0 0.0
      %1143 = vmatpush1.msra.mxu0 0.0
      %1144 = vmatprep.subr.mxu0 0.0
      %1145 = vmatpush1.msra.mxu0 0.0
      %1146 = vmatprep.subr.mxu0 0.0
      %1147 = vmatpush1.msra.mxu0 0.0
      %1148 = vmatprep.subr.mxu0 0.0
      %1149 = vmatpush1.msra.mxu0 0.0
      %1150 = vmatprep.subr.mxu0 0.0
      %1151 = vmatpush1.msra.mxu0 0.0
      %1152 = vmatprep.subr.mxu0 0.0
      %1153 = vmatpush1.msra.mxu0 0.0
      %1154 = vmatprep.subr.mxu0 0.0
      %1155 = vmatpush1.msra.mxu0 0.0
      %1156 = vmatprep.subr.mxu0 0.0
      %1157 = vmatpush1.msra.mxu0 0.0
      %1158 = vmatprep.subr.mxu0 0.0
      %1159 = vmatpush1.msra.mxu0 0.0
      %1160 = vmatprep.subr.mxu0 0.0
      %1161 = vmatpush1.msra.mxu0 0.0
      %1162 = vmatprep.subr.mxu0 0.0
      %1163 = vmatpush1.msra.mxu0 0.0
      %1164 = vmatprep.subr.mxu0 0.0
      %1165 = vmatpush1.msra.mxu0 0.0
      %1166 = vmatprep.subr.mxu0 0.0
      %1167 = vmatpush1.msra.mxu0 0.0
      %1168 = vmatprep.subr.mxu0 0.0
      %1169 = vmatpush1.msra.mxu0 0.0
      %1170 = vmatprep.subr.mxu0 0.0
      %1171 = vmatpush1.msra.mxu0 0.0
      %1172 = vmatprep.subr.mxu0 0.0
      %1173 = vmatpush1.msra.mxu0 0.0
      %1174 = vmatprep.subr.mxu0 0.0
      %1175 = vmatpush1.msra.mxu0 0.0
      %1176 = vmatprep.subr.mxu0 0.0
      %1177 = vmatpush1.msra.mxu0 0.0
      %1178 = vmatprep.subr.mxu0 0.0
      %1179 = vmatpush1.msra.mxu0 0.0
      %1180 = vmatprep.subr.mxu0 0.0
      %1181 = vmatpush1.msra.mxu0 0.0
      %1182 = vmatprep.subr.mxu0 0.0
      %1183 = vmatpush1.msra.mxu0 0.0
      %1184 = vmatprep.subr.mxu0 0.0
      %1185 = vmatpush1.msra.mxu0 0.0
      %1186 = vmatprep.subr.mxu0 0.0
      %1187 = vmatpush1.msra.mxu0 0.0
      %1188 = vmatprep.mubr.f32.mxu0 0.0
      %1189 = vmatmul.mubr.f32.gmra.mrb[0].mxu0 %v1051
      %v1190 = vpop.f32.mrb[0].mxu0
      %v1191 = vadd.f32 %v1048, %v1190
      %v1192 = vpop.f32.mrb[0].mxu0
      %1193 = vdwg.mxu0
      %v1194 = vmax.f32 %v1120, 0.0
      %v1195 = vmax.f32 %v1122, 0.0
      %v1196 = vmax.f32 %v1191, 0.0
      %v1197 = vmul.f32 %v1194, %v851
      %v1198 = vmul.f32 %v1195, %v855
      %v1199 = vmul.f32 %v1196, %v859
      %v1202 = vcombine.low %v1197, %v1198
      %1204 = vst [vmem:[%s298] sm:$0xff] %v1202
      %1205 = vst.msk [vmem:[%s298 + $0x8] sm:$0xf] %vm327, %v1199
      %p1206 = scmp.lt.s32.totalorder %s18, 1
      %s1207 = scalar_select %p1206, %s18, 1
      %s1208 = smul.addr %s1207, 3
      %s1209 = smul.addr %s1208, 4
      %s1210 = scalar_lea.vmem %s7, %s1209
      // Predicated region
      $region49: #{unet_up_conv.3} parent=47 // pred_check
        %p1211 = pneg %p193
      $region50: #{unet_up_conv.3} parent=47 // pred_check_branch
        %1213 = sbr.rel (%p1211) target = $region52
      $region51: #{unet_up_conv.3} parent=47 // pred_region
        _
      $region52: #{unet_up_conv.3} parent=47 // pred_fallthru
        _
    $region48: #{unet_up_conv.3} parent=5 // pred_fallthru
      _
    %p1214 = scmp.le.s32.totalorder 2, %s13
    // Predicated region
    $region53: #{unet_up_conv.3} parent=5 // pred_check
      %p1215 = pneg %p1214
    $region54: #{unet_up_conv.3} parent=5 // pred_check_branch
      %1217 = sbr.rel (%p1215) target = $region56
    $region55: #{unet_up_conv.3} parent=5 // pred_region
      %s1218 = ssub.s32 %s13, 2
      // Predicated region
      $region57: #{unet_up_conv.3} parent=55 // pred_check
        %p1219 = pneg %p199
      $region58: #{unet_up_conv.3} parent=55 // pred_check_branch
        %1221 = sbr.rel (%p1219) target = $region60
      $region59: #{unet_up_conv.3} parent=55 // pred_region
        %p1222 = scmp.lt.s32.totalorder %s19, 1
        %s1223 = scalar_select %p1222, %s19, 1
        %s1224 = smul.addr %s1223, 3
        %s1225 = smul.addr %s1224, 4
        %s1226 = scalar_lea.vmem %s7, %s1225
      $region60: #{unet_up_conv.3} parent=55 // pred_fallthru
        _
    $region56: #{unet_up_conv.3} parent=5 // pred_fallthru
      _
  $region6: #{unet_up_conv.3} parent=0 // loop_footer
    %s17 = sadd.s32 1, %s13
  $region7: #{unet_up_conv.3} parent=0 // loop_footer_branch
    %12 = sbr.rel target = $region3
  $region8: #{unet_up_conv.3} parent=0 // loop_exit
    _

</llo_original>
